<compile_context>
chip_gen: v7x
topology: tpu7x:2x2x1
jax: 0.10.0
libtpu: 0.0.40
codegen_flags: <defaults>
</compile_context>

<pallas_src>
import jax
import jax.numpy as jnp
import numpy as np
from jax.experimental import pallas as pl
from jax.experimental.pallas import tpu as pltpu

TB = 8        # time steps per statically-unrolled inner scan block (sublanes)
MAX_IT = 512  # max I-lanes whose state slice is kept register-resident in the scan


def _silu(x):
    return x * jax.nn.sigmoid(x)


def _round_up(v, m):
    return ((v + m - 1) // m) * m


def mamba_mixer_kernel(x_ref, wix_ref, wig_ref, convw_ref, convb_ref,
                       wts_ref, wb_ref, wc_ref, wdt_ref, dtb_ref,
                       alog_ref, d_ref, wout_ref, o_ref,
                       xpad_s, state_s, dt_s, hs_s, gate_s, y_s, b_s, c_s):
    c_idx = pl.program_id(1)
    N, I = alog_ref.shape
    K = convw_ref.shape[0]
    Lc = x_ref.shape[1]
    P = xpad_s.shape[0] - Lc          # sublane-aligned history rows (>= K-1)

    # static I-tile size for the scan (full width if it already fits)
    if I <= MAX_IT:
        IT = I
    else:
        IT = MAX_IT
        while I % IT != 0:            # keep it a divisor of I
            IT //= 2
    n_it = I // IT
    nblk = Lc // TB

    # ---- cross-chunk carries (SSM state + conv history), reset at chunk 0 --
    @pl.when(c_idx == 0)
    def _init_state():
        state_s[...] = jnp.zeros_like(state_s)

    if K > 1:
        @pl.when(c_idx == 0)
        def _init_hist():
            xpad_s[pl.ds(P - (K - 1), K - 1), :] = jnp.zeros((K - 1, I),
                                                             jnp.float32)

        @pl.when(c_idx > 0)
        def _carry_hist():
            # last K-1 pre-conv rows of the previous chunk = causal context.
            xpad_s[pl.ds(P - (K - 1), K - 1), :] = (
                xpad_s[pl.ds(P + Lc - (K - 1), K - 1), :])

    # ---- in_proj (pre-split bf16 weights, f32 MXU accumulation) ------------
    xb = x_ref[0].astype(jnp.bfloat16)                        # (Lc, H)
    hs_pre = jnp.dot(xb, wix_ref[...], preferred_element_type=jnp.float32)
    gate_s[...] = _silu(jnp.dot(xb, wig_ref[...],
                                preferred_element_type=jnp.float32))

    # ---- depthwise causal conv1d (K taps, groups=I) + SiLU ------------------
    # One staged load of the padded block; taps are in-register shifted slices.
    xpad_s[pl.ds(P, Lc), :] = hs_pre
    conv_w = convw_ref[...]                                   # (K, I)
    acc = hs_pre * conv_w[K - 1:K, :] + convb_ref[...]        # last tap: current rows
    if K > 1:
        xp = xpad_s[...]                                      # single (P+Lc, I) load
        for k in range(K - 1):
            off = P - (K - 1) + k
            acc = acc + xp[off:off + Lc, :] * conv_w[k:k + 1, :]
    hs = _silu(acc)                                           # (Lc, I)
    hs_s[...] = hs

    # ---- x_proj split into (time_step, B, C) + dt_proj + softplus -----------
    hs_b = hs.astype(jnp.bfloat16)
    ts = jnp.dot(hs_b, wts_ref[...], preferred_element_type=jnp.float32)
    b_s[...] = jnp.dot(hs_b, wb_ref[...], preferred_element_type=jnp.float32)
    c_s[...] = jnp.dot(hs_b, wc_ref[...], preferred_element_type=jnp.float32)
    dt_s[...] = jax.nn.softplus(
        jnp.dot(ts, wdt_ref[...], preferred_element_type=jnp.float32)
        + dtb_ref[...])                                       # (Lc, I)

    # identity used to transpose each (TB, N) block to (N, TB) on the idle MXU
    eye_n = (jax.lax.broadcasted_iota(jnp.int32, (N, N), 0) ==
             jax.lax.broadcasted_iota(jnp.int32, (N, N), 1)).astype(jnp.float32)

    # ---- selective scan: I-tiled, register-resident state, hoisted exp ------
    for it in range(n_it):                                    # static I-tile loop
        c0 = it * IT
        neg_a_t = -jnp.exp(alog_ref[:, pl.ds(c0, IT)])        # (N, IT)

        def blk_body(blk, st, _c0=c0, _neg_a=neg_a_t):
            t0 = pl.multiple_of(blk * TB, TB)
            # block-wise operand loads (aligned sublane offsets)
            b_blk = b_s[pl.ds(t0, TB), :]                     # (TB, N)
            c_blk = c_s[pl.ds(t0, TB), :]                     # (TB, N)
            bT = jax.lax.dot_general(eye_n, b_blk, (((1,), (1,)), ((), ())),
                                     preferred_element_type=jnp.float32)
            cT = jax.lax.dot_general(eye_n, c_blk, (((1,), (1,)), ((), ())),
                                     preferred_element_type=jnp.float32)
            dt_blk = dt_s[pl.ds(t0, TB), pl.ds(_c0, IT)]      # (TB, IT)
            hs_blk = hs_s[pl.ds(t0, TB), pl.ds(_c0, IT)]      # (TB, IT)
            u_blk = dt_blk * hs_blk                           # u = dt * hs
            # hoisted off the serial chain: EUP exp + outer products are
            # state-independent, so the recurrence below is VPU-only.
            dA = [jnp.exp(_neg_a * dt_blk[k:k + 1, :]) for k in range(TB)]
            dBu = [bT[:, k:k + 1] * u_blk[k:k + 1, :] for k in range(TB)]
            ys = []
            for k in range(TB):                               # static unroll
                st = dA[k] * st + dBu[k]                      # (N, IT) VPU
                # y_t = C_t . state : VPU mul + cross-sublane XLU reduce
                ys.append(jnp.sum(cT[:, k:k + 1] * st, axis=0, keepdims=True))
            # one aligned (TB, IT) store instead of TB masked row stores
            y_s[pl.ds(t0, TB), pl.ds(_c0, IT)] = jnp.concatenate(ys, axis=0)
            return st

        st_fin = jax.lax.fori_loop(0, nblk, blk_body,
                                   state_s[:, pl.ds(c0, IT)])
        state_s[:, pl.ds(c0, IT)] = st_fin                    # carry to next chunk

    # ---- skip (D), gate and out_proj ----------------------------------------
    scan_out = (y_s[...] + hs_s[...] * d_ref[...]) * gate_s[...]
    o_ref[0] = jnp.dot(scan_out.astype(jnp.bfloat16), wout_ref[...],
                       preferred_element_type=jnp.float32).astype(o_ref.dtype)


def prepare_params(p):
    """Host-side weight prep: split in_proj / x_proj, pre-transpose to the
    layouts the kernel consumes directly, bf16-cast the big matmul weights."""
    I, N = p["A_log"].shape
    R = p["dt_w"].shape[1]
    bf = jnp.bfloat16
    return dict(
        wi_x=p["in_w"][:I].T.astype(bf),            # (H, I)
        wi_g=p["in_w"][I:].T.astype(bf),            # (H, I)
        conv_w=p["conv_w"].astype(jnp.float32),     # (K, I)
        conv_b=p["conv_b"].astype(jnp.float32),     # (1, I)
        w_ts=p["xproj_w"][:R].T.astype(bf),         # (I, R)
        w_b=p["xproj_w"][R:R + N].T.astype(bf),     # (I, N)
        w_c=p["xproj_w"][R + N:].T.astype(bf),      # (I, N)
        w_dt=p["dt_w"].T.astype(jnp.float32),       # (R, I)
        dt_b=p["dt_b"].astype(jnp.float32),         # (1, I)
        a_log_t=p["A_log"].T.astype(jnp.float32),   # (N, I)
        d=p["D"].astype(jnp.float32),               # (1, I)
        w_out=p["out_w"].T.astype(bf),              # (I, H)
    )


def mamba_mixer_forward(x, params, *, chunk=128, vmem_limit_bytes=None):
    """chunk: L-tile per grid step (use ~256 on v6e, keep 128 on v5e/v7x).
    vmem_limit_bytes: raise for production model sizes (None = compiler default)."""
    B, L, H = x.shape
    I, N = params["A_log"].shape
    K = params["conv_w"].shape[0]
    kp = prepare_params(params)

    chunk = _round_up(max(chunk, TB), TB)
    Lc = chunk if L >= chunk else _round_up(L, TB)
    L_pad = _round_up(L, Lc)
    if L_pad != L:
        # zero-pad the tail; padded steps come after every real output so the
        # carried state/conv context for real rows is unaffected.
        x = jnp.pad(x, ((0, 0), (0, L_pad - L), (0, 0)))
    n_chunks = L_pad // Lc
    P = max(8, _round_up(max(K - 1, 1), 8))        # sublane-aligned history rows

    weights = [kp["wi_x"], kp["wi_g"], kp["conv_w"], kp["conv_b"], kp["w_ts"],
               kp["w_b"], kp["w_c"], kp["w_dt"], kp["dt_b"], kp["a_log_t"],
               kp["d"], kp["w_out"]]

    def wspec(arr):
        nd = arr.ndim
        return pl.BlockSpec(arr.shape, lambda b, c, _nd=nd: (0,) * _nd)

    in_specs = ([pl.BlockSpec((1, Lc, H), lambda b, c: (b, c, 0))]
                + [wspec(w) for w in weights])
    out_spec = pl.BlockSpec((1, Lc, H), lambda b, c: (b, c, 0))

    out = pl.pallas_call(
        mamba_mixer_kernel,
        out_shape=jax.ShapeDtypeStruct((B, L_pad, H), jnp.float32),
        grid_spec=pltpu.PrefetchScalarGridSpec(
            num_scalar_prefetch=0,
            # batch axis "parallel" (per-core scratch), chunk axis innermost and
            # "arbitrary" so the VMEM-carried state/conv context is valid.
            grid=(B, n_chunks),
            in_specs=in_specs,
            out_specs=out_spec,
            scratch_shapes=[
                pltpu.VMEM((P + Lc, I), jnp.float32),  # conv staging + history
                pltpu.VMEM((N, I), jnp.float32),       # carried SSM state
                pltpu.VMEM((Lc, I), jnp.float32),      # dt (post softplus)
                pltpu.VMEM((Lc, I), jnp.float32),      # hs (post conv + SiLU)
                pltpu.VMEM((Lc, I), jnp.float32),      # silu(gate)
                pltpu.VMEM((Lc, I), jnp.float32),      # scan outputs (lane-dense)
                pltpu.VMEM((Lc, N), jnp.float32),      # B(t)
                pltpu.VMEM((Lc, N), jnp.float32),      # C(t)
            ]),
        compiler_params=pltpu.CompilerParams(
            dimension_semantics=("parallel", "arbitrary"),
            vmem_limit_bytes=vmem_limit_bytes),
    )(x, *weights)

    if L_pad != L:
        out = out[:, :L, :]
    return out


def mamba_mixer_ref(x, p):
    """Pure-JAX transcription of MambaMixer.slow_forward (cache_params=None),
    using the same bf16 weight casts as the kernel."""
    B, L, H = x.shape
    I, N = p["A_log"].shape
    R = p["dt_w"].shape[1]
    K = p["conv_w"].shape[0]
    bf = jnp.bfloat16

    proj = jnp.dot(x.astype(bf), p["in_w"].astype(bf).T,
                   preferred_element_type=jnp.float32)        # (B, L, 2I)
    hs_pre, gate = proj[..., :I], proj[..., I:]
    xp = jnp.pad(hs_pre, ((0, 0), (K - 1, 0), (0, 0)))
    conv = sum(xp[:, k:k + L, :] * p["conv_w"][k][None, None, :]
               for k in range(K))
    hs = jax.nn.silu(conv + p["conv_b"][None])                # (B, L, I)

    ssm_p = jnp.dot(hs.astype(bf), p["xproj_w"].astype(bf).T,
                    preferred_element_type=jnp.float32)
    ts, Bm, Cm = ssm_p[..., :R], ssm_p[..., R:R + N], ssm_p[..., R + N:]
    dt = jax.nn.softplus(jnp.dot(ts, p["dt_w"].T,
                                 preferred_element_type=jnp.float32)
                         + p["dt_b"])                         # (B, L, I)

    A = -jnp.exp(p["A_log"])                                  # (I, N)
    dA = jnp.exp(dt[..., None] * A[None, None])               # (B, L, I, N)
    dBu = dt[..., None] * Bm[:, :, None, :] * hs[..., None]

    def step(state, inp):
        dA_t, dBu_t, c_t = inp
        state = dA_t * state + dBu_t                          # (B, I, N)
        return state, jnp.einsum("bin,bn->bi", state, c_t)

    state0 = jnp.zeros((B, I, N), jnp.float32)
    _, ys = jax.lax.scan(step, state0,
                         (dA.transpose(1, 0, 2, 3),
                          dBu.transpose(1, 0, 2, 3),
                          Cm.transpose(1, 0, 2)))
    y = ys.transpose(1, 0, 2) + hs * p["D"]
    y = y * jax.nn.silu(gate)
    return jnp.dot(y.astype(bf), p["out_w"].astype(bf).T,
                   preferred_element_type=jnp.float32)


if __name__ == "__main__":
    # Small config consistent with MambaMixer.__init__:
    #   hidden_size H=32, intermediate_size I=2*H=64, state_size N=8,
    #   conv_kernel K=4, time_step_rank R=2, hidden_act='silu',
    #   use_bias=False, use_conv_bias=True.
    B, L, H = 2, 8, 32
    I, N, K, R = 64, 8, 4, 2

    key = jax.random.PRNGKey(0)
    keys = jax.random.split(key, 9)

    params = {
        "in_w":    0.1 * jax.random.normal(keys[1], (2 * I, H), jnp.float32),
        # PyTorch conv weight is (I, 1, K); stored here transposed as (K, I).
        "conv_w":  0.3 * jax.random.normal(keys[2], (K, I), jnp.float32),
        "conv_b":  0.1 * jax.random.normal(keys[3], (1, I), jnp.float32),
        "xproj_w": 0.1 * jax.random.normal(keys[4], (R + 2 * N, I), jnp.float32),
        "dt_w":    0.1 * jax.random.normal(keys[5], (I, R), jnp.float32),
        "dt_b":    0.1 * jax.random.normal(keys[6], (1, I), jnp.float32),
        # A_log = log(arange(1, N+1)) broadcast over intermediate channels.
        "A_log":   jnp.broadcast_to(
            jnp.log(jnp.arange(1, N + 1, dtype=jnp.float32))[None, :],
            (I, N)).copy(),
        "D":       jnp.ones((1, I), jnp.float32),
        "out_w":   0.1 * jax.random.normal(keys[7], (H, I), jnp.float32),
    }

    # ---- test 1: small single-chunk sequence -------------------------------
    x1 = jax.random.normal(keys[0], (B, L, H), jnp.float32)
    out1 = jax.block_until_ready(mamba_mixer_forward(x1, params))
    ref1 = jax.block_until_ready(mamba_mixer_ref(x1, params))
    err1 = float(np.max(np.abs(np.asarray(out1) - np.asarray(ref1))))
    if not np.allclose(np.asarray(out1), np.asarray(ref1),
                       rtol=5e-3, atol=5e-3):
        raise AssertionError(f"single-chunk mismatch, max abs diff = {err1}")

    # ---- test 2: multi-chunk + ragged tail (exercises state/conv carry) ----
    L2 = 40
    x2 = jax.random.normal(keys[8], (B, L2, H), jnp.float32)
    out2 = jax.block_until_ready(mamba_mixer_forward(x2, params, chunk=16))
    ref2 = jax.block_until_ready(mamba_mixer_ref(x2, params))
    err2 = float(np.max(np.abs(np.asarray(out2) - np.asarray(ref2))))
    if not np.allclose(np.asarray(out2), np.asarray(ref2),
                       rtol=5e-3, atol=5e-3):
        raise AssertionError(f"multi-chunk mismatch, max abs diff = {err2}")

    print("KERNEL_OK")
</pallas_src>

<mosaic_0001>
module attributes {stable_mosaic.version = 11 : i64} {
  func.func @mamba_mixer_kernel(%arg0: i32, %arg1: i32, %arg2: memref<1x8x32xf32, #tpu.memory_space<vmem>>, %arg3: memref<32x64xbf16, #tpu.memory_space<vmem>>, %arg4: memref<32x64xbf16, #tpu.memory_space<vmem>>, %arg5: memref<4x64xf32, #tpu.memory_space<vmem>>, %arg6: memref<1x64xf32, #tpu.memory_space<vmem>>, %arg7: memref<64x2xbf16, #tpu.memory_space<vmem>>, %arg8: memref<64x8xbf16, #tpu.memory_space<vmem>>, %arg9: memref<64x8xbf16, #tpu.memory_space<vmem>>, %arg10: memref<2x64xf32, #tpu.memory_space<vmem>>, %arg11: memref<1x64xf32, #tpu.memory_space<vmem>>, %arg12: memref<8x64xf32, #tpu.memory_space<vmem>>, %arg13: memref<1x64xf32, #tpu.memory_space<vmem>>, %arg14: memref<64x32xbf16, #tpu.memory_space<vmem>>, %arg15: memref<1x8x32xf32, #tpu.memory_space<vmem>>, %arg16: memref<16x64xf32, #tpu.memory_space<vmem>>, %arg17: memref<8x64xf32, #tpu.memory_space<vmem>>, %arg18: memref<8x64xf32, #tpu.memory_space<vmem>>, %arg19: memref<8x64xf32, #tpu.memory_space<vmem>>, %arg20: memref<8x64xf32, #tpu.memory_space<vmem>>, %arg21: memref<8x64xf32, #tpu.memory_space<vmem>>, %arg22: memref<8x8xf32, #tpu.memory_space<vmem>>, %arg23: memref<8x8xf32, #tpu.memory_space<vmem>>) attributes {dimension_semantics = [#tpu.dimension_semantics<parallel>, #tpu.dimension_semantics<arbitrary>], iteration_bounds = array<i64: 2, 1>, scalar_prefetch = 0 : i64, scratch_operands = 8 : i64, tpu.core_type = #tpu.core_type<tc>, window_params = [{transform_indices = @transform_0, window_bounds = array<i64: 1, 8, 32>}, {pipeline_mode = #tpu.pipeline_mode<synchronous>, transform_indices = @transform_1, window_bounds = array<i64: 32, 64>}, {pipeline_mode = #tpu.pipeline_mode<synchronous>, transform_indices = @transform_2, window_bounds = array<i64: 32, 64>}, {pipeline_mode = #tpu.pipeline_mode<synchronous>, transform_indices = @transform_3, window_bounds = array<i64: 4, 64>}, {pipeline_mode = #tpu.pipeline_mode<synchronous>, transform_indices = @transform_4, window_bounds = array<i64: 1, 64>}, {pipeline_mode = #tpu.pipeline_mode<synchronous>, transform_indices = @transform_5, window_bounds = array<i64: 64, 2>}, {pipeline_mode = #tpu.pipeline_mode<synchronous>, transform_indices = @transform_6, window_bounds = array<i64: 64, 8>}, {pipeline_mode = #tpu.pipeline_mode<synchronous>, transform_indices = @transform_7, window_bounds = array<i64: 64, 8>}, {pipeline_mode = #tpu.pipeline_mode<synchronous>, transform_indices = @transform_8, window_bounds = array<i64: 2, 64>}, {pipeline_mode = #tpu.pipeline_mode<synchronous>, transform_indices = @transform_9, window_bounds = array<i64: 1, 64>}, {pipeline_mode = #tpu.pipeline_mode<synchronous>, transform_indices = @transform_10, window_bounds = array<i64: 8, 64>}, {pipeline_mode = #tpu.pipeline_mode<synchronous>, transform_indices = @transform_11, window_bounds = array<i64: 1, 64>}, {pipeline_mode = #tpu.pipeline_mode<synchronous>, transform_indices = @transform_12, window_bounds = array<i64: 64, 32>}, {transform_indices = @transform_13, window_bounds = array<i64: 1, 8, 32>}]} {
    %c0_i32 = arith.constant 0 : i32
    %0 = arith.cmpi eq, %arg1, %c0_i32 : i32
    %1 = arith.extui %0 : i1 to i32
    %c0_i32_0 = arith.constant 0 : i32
    %2 = arith.cmpi ne, %1, %c0_i32_0 : i32
    scf.if %2 {
      %cst_84 = arith.constant 0.000000e+00 : f32
      %252 = vector.broadcast %cst_84 : f32 to vector<8x64xf32>
      %c0_85 = arith.constant 0 : index
      %c0_86 = arith.constant 0 : index
      %253 = vector.load %arg17[%c0_85, %c0_86] : memref<8x64xf32, #tpu.memory_space<vmem>>, vector<8x64xf32>
      tpu.vector_store %arg17[%c0_85, %c0_86], %252 {strides = array<i32>} : memref<8x64xf32, #tpu.memory_space<vmem>>, vector<8x64xf32>,
    } else {
    }
    %c0_i32_1 = arith.constant 0 : i32
    %3 = arith.cmpi eq, %arg1, %c0_i32_1 : i32
    %4 = arith.extui %3 : i1 to i32
    %c0_i32_2 = arith.constant 0 : i32
    %5 = arith.cmpi ne, %4, %c0_i32_2 : i32
    scf.if %5 {
      %cst_84 = arith.constant 0.000000e+00 : f32
      %252 = vector.broadcast %cst_84 : f32 to vector<3x64xf32>
      %c5 = arith.constant 5 : index
      %c0_85 = arith.constant 0 : index
      %253 = vector.load %arg16[%c5, %c0_85] : memref<16x64xf32, #tpu.memory_space<vmem>>, vector<3x64xf32>
      tpu.vector_store %arg16[%c5, %c0_85], %252 {strides = array<i32>} : memref<16x64xf32, #tpu.memory_space<vmem>>, vector<3x64xf32>,
    } else {
    }
    %c0_i32_3 = arith.constant 0 : i32
    %6 = arith.cmpi sgt, %arg1, %c0_i32_3 : i32
    %7 = arith.extui %6 : i1 to i32
    %c0_i32_4 = arith.constant 0 : i32
    %8 = arith.cmpi ne, %7, %c0_i32_4 : i32
    scf.if %8 {
      %c13 = arith.constant 13 : index
      %c0_84 = arith.constant 0 : index
      %252 = vector.load %arg16[%c13, %c0_84] : memref<16x64xf32, #tpu.memory_space<vmem>>, vector<3x64xf32>
      %c5 = arith.constant 5 : index
      %c0_85 = arith.constant 0 : index
      %253 = vector.load %arg16[%c5, %c0_85] : memref<16x64xf32, #tpu.memory_space<vmem>>, vector<3x64xf32>
      tpu.vector_store %arg16[%c5, %c0_85], %252 {strides = array<i32>} : memref<16x64xf32, #tpu.memory_space<vmem>>, vector<3x64xf32>,
    } else {
    }
    %c0 = arith.constant 0 : index
    %c0_5 = arith.constant 0 : index
    %c0_6 = arith.constant 0 : index
    %9 = vector.load %arg2[%c0, %c0_5, %c0_6] : memref<1x8x32xf32, #tpu.memory_space<vmem>>, vector<1x8x32xf32>
    %10 = vector.shape_cast %9 : vector<1x8x32xf32> to vector<8x32xf32>
    %11 = arith.truncf %10 : vector<8x32xf32> to vector<8x32xbf16>
    %c0_7 = arith.constant 0 : index
    %c0_8 = arith.constant 0 : index
    %12 = vector.load %arg3[%c0_7, %c0_8] : memref<32x64xbf16, #tpu.memory_space<vmem>>, vector<32x64xbf16>
    %cst = arith.constant dense<0.000000e+00> : vector<8x64xf32>
    %13 = tpu.matmul %11, %12, %cst {dimension_numbers = #tpu.dot_dimension_numbers<[1], [0], [0], [1], [0, 0, 1, 1], [], []>} : vector<8x32xbf16>, vector<32x64xbf16>, vector<8x64xf32> -> vector<8x64xf32>
    %c0_9 = arith.constant 0 : index
    %c0_10 = arith.constant 0 : index
    %14 = vector.load %arg4[%c0_9, %c0_10] : memref<32x64xbf16, #tpu.memory_space<vmem>>, vector<32x64xbf16>
    %cst_11 = arith.constant dense<0.000000e+00> : vector<8x64xf32>
    %15 = tpu.matmul %11, %14, %cst_11 {dimension_numbers = #tpu.dot_dimension_numbers<[1], [0], [0], [1], [0, 0, 1, 1], [], []>} : vector<8x32xbf16>, vector<32x64xbf16>, vector<8x64xf32> -> vector<8x64xf32>
    %16 = arith.negf %15 : vector<8x64xf32>
    %17 = math.exp %16 : vector<8x64xf32>
    %cst_12 = arith.constant 1.000000e+00 : f32
    %18 = vector.broadcast %cst_12 : f32 to vector<8x64xf32>
    %19 = arith.addf %18, %17 : vector<8x64xf32>
    %20 = arith.divf %18, %19 : vector<8x64xf32>
    %21 = arith.mulf %15, %20 : vector<8x64xf32>
    %c0_13 = arith.constant 0 : index
    %c0_14 = arith.constant 0 : index
    %22 = vector.load %arg20[%c0_13, %c0_14] : memref<8x64xf32, #tpu.memory_space<vmem>>, vector<8x64xf32>
    tpu.vector_store %arg20[%c0_13, %c0_14], %21 {strides = array<i32>} : memref<8x64xf32, #tpu.memory_space<vmem>>, vector<8x64xf32>,
    %c8 = arith.constant 8 : index
    %c0_15 = arith.constant 0 : index
    %23 = vector.load %arg16[%c8, %c0_15] : memref<16x64xf32, #tpu.memory_space<vmem>>, vector<8x64xf32>
    tpu.vector_store %arg16[%c8, %c0_15], %13 {strides = array<i32>} : memref<16x64xf32, #tpu.memory_space<vmem>>, vector<8x64xf32>,
    %c0_16 = arith.constant 0 : index
    %c0_17 = arith.constant 0 : index
    %24 = vector.load %arg5[%c0_16, %c0_17] : memref<4x64xf32, #tpu.memory_space<vmem>>, vector<4x64xf32>
    %25 = vector.extract_strided_slice %24 {offsets = [3, 0], sizes = [1, 64], strides = [1, 1]} : vector<4x64xf32> to vector<1x64xf32>
    %26 = vector.broadcast %25 : vector<1x64xf32> to vector<8x64xf32>
    %27 = arith.mulf %13, %26 : vector<8x64xf32>
    %c0_18 = arith.constant 0 : index
    %c0_19 = arith.constant 0 : index
    %28 = vector.load %arg6[%c0_18, %c0_19] : memref<1x64xf32, #tpu.memory_space<vmem>>, vector<1x64xf32>
    %29 = vector.broadcast %28 : vector<1x64xf32> to vector<8x64xf32>
    %30 = arith.addf %27, %29 : vector<8x64xf32>
    %c0_20 = arith.constant 0 : index
    %c0_21 = arith.constant 0 : index
    %31 = vector.load %arg16[%c0_20, %c0_21] : memref<16x64xf32, #tpu.memory_space<vmem>>, vector<16x64xf32>
    %32 = vector.extract_strided_slice %31 {offsets = [5, 0], sizes = [8, 64], strides = [1, 1]} : vector<16x64xf32> to vector<8x64xf32>
    %33 = vector.extract_strided_slice %24 {offsets = [0, 0], sizes = [1, 64], strides = [1, 1]} : vector<4x64xf32> to vector<1x64xf32>
    %34 = vector.broadcast %33 : vector<1x64xf32> to vector<8x64xf32>
    %35 = arith.mulf %32, %34 : vector<8x64xf32>
    %36 = arith.addf %30, %35 : vector<8x64xf32>
    %37 = vector.extract_strided_slice %31 {offsets = [6, 0], sizes = [8, 64], strides = [1, 1]} : vector<16x64xf32> to vector<8x64xf32>
    %38 = vector.extract_strided_slice %24 {offsets = [1, 0], sizes = [1, 64], strides = [1, 1]} : vector<4x64xf32> to vector<1x64xf32>
    %39 = vector.broadcast %38 : vector<1x64xf32> to vector<8x64xf32>
    %40 = arith.mulf %37, %39 : vector<8x64xf32>
    %41 = arith.addf %36, %40 : vector<8x64xf32>
    %42 = vector.extract_strided_slice %31 {offsets = [7, 0], sizes = [8, 64], strides = [1, 1]} : vector<16x64xf32> to vector<8x64xf32>
    %43 = vector.extract_strided_slice %24 {offsets = [2, 0], sizes = [1, 64], strides = [1, 1]} : vector<4x64xf32> to vector<1x64xf32>
    %44 = vector.broadcast %43 : vector<1x64xf32> to vector<8x64xf32>
    %45 = arith.mulf %42, %44 : vector<8x64xf32>
    %46 = arith.addf %41, %45 : vector<8x64xf32>
    %47 = arith.negf %46 : vector<8x64xf32>
    %48 = math.exp %47 : vector<8x64xf32>
    %cst_22 = arith.constant 1.000000e+00 : f32
    %49 = vector.broadcast %cst_22 : f32 to vector<8x64xf32>
    %50 = arith.addf %49, %48 : vector<8x64xf32>
    %51 = arith.divf %49, %50 : vector<8x64xf32>
    %52 = arith.mulf %46, %51 : vector<8x64xf32>
    %c0_23 = arith.constant 0 : index
    %c0_24 = arith.constant 0 : index
    %53 = vector.load %arg19[%c0_23, %c0_24] : memref<8x64xf32, #tpu.memory_space<vmem>>, vector<8x64xf32>
    tpu.vector_store %arg19[%c0_23, %c0_24], %52 {strides = array<i32>} : memref<8x64xf32, #tpu.memory_space<vmem>>, vector<8x64xf32>,
    %54 = arith.truncf %52 : vector<8x64xf32> to vector<8x64xbf16>
    %c0_25 = arith.constant 0 : index
    %c0_26 = arith.constant 0 : index
    %55 = vector.load %arg7[%c0_25, %c0_26] : memref<64x2xbf16, #tpu.memory_space<vmem>>, vector<64x2xbf16>
    %cst_27 = arith.constant dense<0.000000e+00> : vector<8x2xf32>
    %56 = tpu.matmul %54, %55, %cst_27 {dimension_numbers = #tpu.dot_dimension_numbers<[1], [0], [0], [1], [0, 0, 1, 1], [], []>} : vector<8x64xbf16>, vector<64x2xbf16>, vector<8x2xf32> -> vector<8x2xf32>
    %c0_28 = arith.constant 0 : index
    %c0_29 = arith.constant 0 : index
    %57 = vector.load %arg8[%c0_28, %c0_29] : memref<64x8xbf16, #tpu.memory_space<vmem>>, vector<64x8xbf16>
    %cst_30 = arith.constant dense<0.000000e+00> : vector<8x8xf32>
    %58 = tpu.matmul %54, %57, %cst_30 {dimension_numbers = #tpu.dot_dimension_numbers<[1], [0], [0], [1], [0, 0, 1, 1], [], []>} : vector<8x64xbf16>, vector<64x8xbf16>, vector<8x8xf32> -> vector<8x8xf32>
    %c0_31 = arith.constant 0 : index
    %c0_32 = arith.constant 0 : index
    %59 = vector.load %arg22[%c0_31, %c0_32] : memref<8x8xf32, #tpu.memory_space<vmem>>, vector<8x8xf32>
    tpu.vector_store %arg22[%c0_31, %c0_32], %58 {strides = array<i32>} : memref<8x8xf32, #tpu.memory_space<vmem>>, vector<8x8xf32>,
    %c0_33 = arith.constant 0 : index
    %c0_34 = arith.constant 0 : index
    %60 = vector.load %arg9[%c0_33, %c0_34] : memref<64x8xbf16, #tpu.memory_space<vmem>>, vector<64x8xbf16>
    %cst_35 = arith.constant dense<0.000000e+00> : vector<8x8xf32>
    %61 = tpu.matmul %54, %60, %cst_35 {dimension_numbers = #tpu.dot_dimension_numbers<[1], [0], [0], [1], [0, 0, 1, 1], [], []>} : vector<8x64xbf16>, vector<64x8xbf16>, vector<8x8xf32> -> vector<8x8xf32>
    %c0_36 = arith.constant 0 : index
    %c0_37 = arith.constant 0 : index
    %62 = vector.load %arg23[%c0_36, %c0_37] : memref<8x8xf32, #tpu.memory_space<vmem>>, vector<8x8xf32>
    tpu.vector_store %arg23[%c0_36, %c0_37], %61 {strides = array<i32>} : memref<8x8xf32, #tpu.memory_space<vmem>>, vector<8x8xf32>,
    %c0_38 = arith.constant 0 : index
    %c0_39 = arith.constant 0 : index
    %63 = vector.load %arg10[%c0_38, %c0_39] : memref<2x64xf32, #tpu.memory_space<vmem>>, vector<2x64xf32>
    %cst_40 = arith.constant dense<0.000000e+00> : vector<8x64xf32>
    %64 = tpu.matmul %56, %63, %cst_40 {dimension_numbers = #tpu.dot_dimension_numbers<[1], [0], [0], [1], [0, 0, 1, 1], [], []>} : vector<8x2xf32>, vector<2x64xf32>, vector<8x64xf32> -> vector<8x64xf32>
    %c0_41 = arith.constant 0 : index
    %c0_42 = arith.constant 0 : index
    %65 = vector.load %arg11[%c0_41, %c0_42] : memref<1x64xf32, #tpu.memory_space<vmem>>, vector<1x64xf32>
    %66 = vector.broadcast %65 : vector<1x64xf32> to vector<8x64xf32>
    %67 = arith.addf %64, %66 : vector<8x64xf32>
    %cst_43 = arith.constant 0.000000e+00 : f32
    %68 = vector.broadcast %cst_43 : f32 to vector<8x64xf32>
    %69 = arith.maximumf %67, %68 : vector<8x64xf32>
    %70 = vector.broadcast %cst_43 : f32 to vector<8x64xf32>
    %71 = arith.subf %67, %70 : vector<8x64xf32>
    %72 = arith.cmpf one, %71, %71 : vector<8x64xf32>
    %73 = vector.broadcast %cst_43 : f32 to vector<8x64xf32>
    %74 = arith.addf %67, %73 : vector<8x64xf32>
    %75 = math.absf %71 : vector<8x64xf32>
    %cst_44 = arith.constant 0.000000e+00 : f32
    %76 = vector.broadcast %cst_44 : f32 to vector<8x64xf32>
    %77 = arith.subf %76, %75 : vector<8x64xf32>
    %78 = math.exp %77 : vector<8x64xf32>
    %79 = math.log1p %78 : vector<8x64xf32>
    %80 = arith.addf %69, %79 : vector<8x64xf32>
    %81 = arith.select %72, %74, %80 : vector<8x64xi1>, vector<8x64xf32>
    %c0_45 = arith.constant 0 : index
    %c0_46 = arith.constant 0 : index
    %82 = vector.load %arg18[%c0_45, %c0_46] : memref<8x64xf32, #tpu.memory_space<vmem>>, vector<8x64xf32>
    tpu.vector_store %arg18[%c0_45, %c0_46], %81 {strides = array<i32>} : memref<8x64xf32, #tpu.memory_space<vmem>>, vector<8x64xf32>,
    %83 = tpu.iota {dimensions = array<i32: 0>} : vector<8x8xi32>
    %84 = tpu.iota {dimensions = array<i32: 1>} : vector<8x8xi32>
    %85 = arith.cmpi eq, %83, %84 : vector<8x8xi32>
    %86 = arith.extui %85 : vector<8x8xi1> to vector<8x8xi32>
    %87 = arith.sitofp %86 : vector<8x8xi32> to vector<8x8xf32>
    %c0_47 = arith.constant 0 : index
    %c0_48 = arith.constant 0 : index
    %88 = vector.load %arg12[%c0_47, %c0_48] : memref<8x64xf32, #tpu.memory_space<vmem>>, vector<8x64xf32>
    %89 = math.exp %88 : vector<8x64xf32>
    %cst_49 = arith.constant 0.000000e+00 : f32
    %90 = vector.broadcast %cst_49 : f32 to vector<8x64xf32>
    %91 = arith.subf %90, %89 : vector<8x64xf32>
    %c0_50 = arith.constant 0 : index
    %c0_51 = arith.constant 0 : index
    %92 = vector.load %arg17[%c0_50, %c0_51] : memref<8x64xf32, #tpu.memory_space<vmem>>, vector<8x64xf32>
    %c0_i32_52 = arith.constant 0 : i32
    %c8_i32 = arith.constant 8 : i32
    %93 = arith.muli %c0_i32_52, %c8_i32 : i32
    %94 = tpu.assume_multiple %93, 8 : i32
    %95 = arith.index_cast %94 : i32 to index
    %c0_53 = arith.constant 0 : index
    %96 = vector.load %arg22[%95, %c0_53] : memref<8x8xf32, #tpu.memory_space<vmem>>, vector<8x8xf32>
    %97 = arith.index_cast %94 : i32 to index
    %c0_54 = arith.constant 0 : index
    %98 = vector.load %arg23[%97, %c0_54] : memref<8x8xf32, #tpu.memory_space<vmem>>, vector<8x8xf32>
    %cst_55 = arith.constant dense<0.000000e+00> : vector<8x8xf32>
    %99 = tpu.matmul %87, %96, %cst_55 {dimension_numbers = #tpu.dot_dimension_numbers<[1], [1], [0], [0], [0, 0, 1, 0], [], []>} : vector<8x8xf32>, vector<8x8xf32>, vector<8x8xf32> -> vector<8x8xf32>
    %cst_56 = arith.constant dense<0.000000e+00> : vector<8x8xf32>
    %100 = tpu.matmul %87, %98, %cst_56 {dimension_numbers = #tpu.dot_dimension_numbers<[1], [1], [0], [0], [0, 0, 1, 0], [], []>} : vector<8x8xf32>, vector<8x8xf32>, vector<8x8xf32> -> vector<8x8xf32>
    %101 = arith.index_cast %94 : i32 to index
    %c0_57 = arith.constant 0 : index
    %102 = vector.load %arg18[%101, %c0_57] : memref<8x64xf32, #tpu.memory_space<vmem>>, vector<8x64xf32>
    %103 = arith.index_cast %94 : i32 to index
    %c0_58 = arith.constant 0 : index
    %104 = vector.load %arg19[%103, %c0_58] : memref<8x64xf32, #tpu.memory_space<vmem>>, vector<8x64xf32>
    %105 = arith.mulf %102, %104 : vector<8x64xf32>
    %106 = vector.extract_strided_slice %102 {offsets = [0, 0], sizes = [1, 64], strides = [1, 1]} : vector<8x64xf32> to vector<1x64xf32>
    %107 = vector.broadcast %106 : vector<1x64xf32> to vector<8x64xf32>
    %108 = arith.mulf %91, %107 : vector<8x64xf32>
    %109 = math.exp %108 : vector<8x64xf32>
    %110 = vector.extract_strided_slice %102 {offsets = [1, 0], sizes = [1, 64], strides = [1, 1]} : vector<8x64xf32> to vector<1x64xf32>
    %111 = vector.broadcast %110 : vector<1x64xf32> to vector<8x64xf32>
    %112 = arith.mulf %91, %111 : vector<8x64xf32>
    %113 = math.exp %112 : vector<8x64xf32>
    %114 = vector.extract_strided_slice %102 {offsets = [2, 0], sizes = [1, 64], strides = [1, 1]} : vector<8x64xf32> to vector<1x64xf32>
    %115 = vector.broadcast %114 : vector<1x64xf32> to vector<8x64xf32>
    %116 = arith.mulf %91, %115 : vector<8x64xf32>
    %117 = math.exp %116 : vector<8x64xf32>
    %118 = vector.extract_strided_slice %102 {offsets = [3, 0], sizes = [1, 64], strides = [1, 1]} : vector<8x64xf32> to vector<1x64xf32>
    %119 = vector.broadcast %118 : vector<1x64xf32> to vector<8x64xf32>
    %120 = arith.mulf %91, %119 : vector<8x64xf32>
    %121 = math.exp %120 : vector<8x64xf32>
    %122 = vector.extract_strided_slice %102 {offsets = [4, 0], sizes = [1, 64], strides = [1, 1]} : vector<8x64xf32> to vector<1x64xf32>
    %123 = vector.broadcast %122 : vector<1x64xf32> to vector<8x64xf32>
    %124 = arith.mulf %91, %123 : vector<8x64xf32>
    %125 = math.exp %124 : vector<8x64xf32>
    %126 = vector.extract_strided_slice %102 {offsets = [5, 0], sizes = [1, 64], strides = [1, 1]} : vector<8x64xf32> to vector<1x64xf32>
    %127 = vector.broadcast %126 : vector<1x64xf32> to vector<8x64xf32>
    %128 = arith.mulf %91, %127 : vector<8x64xf32>
    %129 = math.exp %128 : vector<8x64xf32>
    %130 = vector.extract_strided_slice %102 {offsets = [6, 0], sizes = [1, 64], strides = [1, 1]} : vector<8x64xf32> to vector<1x64xf32>
    %131 = vector.broadcast %130 : vector<1x64xf32> to vector<8x64xf32>
    %132 = arith.mulf %91, %131 : vector<8x64xf32>
    %133 = math.exp %132 : vector<8x64xf32>
    %134 = vector.extract_strided_slice %102 {offsets = [7, 0], sizes = [1, 64], strides = [1, 1]} : vector<8x64xf32> to vector<1x64xf32>
    %135 = vector.broadcast %134 : vector<1x64xf32> to vector<8x64xf32>
    %136 = arith.mulf %91, %135 : vector<8x64xf32>
    %137 = math.exp %136 : vector<8x64xf32>
    %138 = vector.extract_strided_slice %99 {offsets = [0, 0], sizes = [8, 1], strides = [1, 1]} : vector<8x8xf32> to vector<8x1xf32>
    %139 = vector.extract_strided_slice %105 {offsets = [0, 0], sizes = [1, 64], strides = [1, 1]} : vector<8x64xf32> to vector<1x64xf32>
    %140 = vector.broadcast %138 : vector<8x1xf32> to vector<8x64xf32>
    %141 = vector.broadcast %139 : vector<1x64xf32> to vector<8x64xf32>
    %142 = arith.mulf %140, %141 : vector<8x64xf32>
    %143 = vector.extract_strided_slice %99 {offsets = [0, 1], sizes = [8, 1], strides = [1, 1]} : vector<8x8xf32> to vector<8x1xf32>
    %144 = vector.extract_strided_slice %105 {offsets = [1, 0], sizes = [1, 64], strides = [1, 1]} : vector<8x64xf32> to vector<1x64xf32>
    %145 = vector.broadcast %143 : vector<8x1xf32> to vector<8x64xf32>
    %146 = vector.broadcast %144 : vector<1x64xf32> to vector<8x64xf32>
    %147 = arith.mulf %145, %146 : vector<8x64xf32>
    %148 = vector.extract_strided_slice %99 {offsets = [0, 2], sizes = [8, 1], strides = [1, 1]} : vector<8x8xf32> to vector<8x1xf32>
    %149 = vector.extract_strided_slice %105 {offsets = [2, 0], sizes = [1, 64], strides = [1, 1]} : vector<8x64xf32> to vector<1x64xf32>
    %150 = vector.broadcast %148 : vector<8x1xf32> to vector<8x64xf32>
    %151 = vector.broadcast %149 : vector<1x64xf32> to vector<8x64xf32>
    %152 = arith.mulf %150, %151 : vector<8x64xf32>
    %153 = vector.extract_strided_slice %99 {offsets = [0, 3], sizes = [8, 1], strides = [1, 1]} : vector<8x8xf32> to vector<8x1xf32>
    %154 = vector.extract_strided_slice %105 {offsets = [3, 0], sizes = [1, 64], strides = [1, 1]} : vector<8x64xf32> to vector<1x64xf32>
    %155 = vector.broadcast %153 : vector<8x1xf32> to vector<8x64xf32>
    %156 = vector.broadcast %154 : vector<1x64xf32> to vector<8x64xf32>
    %157 = arith.mulf %155, %156 : vector<8x64xf32>
    %158 = vector.extract_strided_slice %99 {offsets = [0, 4], sizes = [8, 1], strides = [1, 1]} : vector<8x8xf32> to vector<8x1xf32>
    %159 = vector.extract_strided_slice %105 {offsets = [4, 0], sizes = [1, 64], strides = [1, 1]} : vector<8x64xf32> to vector<1x64xf32>
    %160 = vector.broadcast %158 : vector<8x1xf32> to vector<8x64xf32>
    %161 = vector.broadcast %159 : vector<1x64xf32> to vector<8x64xf32>
    %162 = arith.mulf %160, %161 : vector<8x64xf32>
    %163 = vector.extract_strided_slice %99 {offsets = [0, 5], sizes = [8, 1], strides = [1, 1]} : vector<8x8xf32> to vector<8x1xf32>
    %164 = vector.extract_strided_slice %105 {offsets = [5, 0], sizes = [1, 64], strides = [1, 1]} : vector<8x64xf32> to vector<1x64xf32>
    %165 = vector.broadcast %163 : vector<8x1xf32> to vector<8x64xf32>
    %166 = vector.broadcast %164 : vector<1x64xf32> to vector<8x64xf32>
    %167 = arith.mulf %165, %166 : vector<8x64xf32>
    %168 = vector.extract_strided_slice %99 {offsets = [0, 6], sizes = [8, 1], strides = [1, 1]} : vector<8x8xf32> to vector<8x1xf32>
    %169 = vector.extract_strided_slice %105 {offsets = [6, 0], sizes = [1, 64], strides = [1, 1]} : vector<8x64xf32> to vector<1x64xf32>
    %170 = vector.broadcast %168 : vector<8x1xf32> to vector<8x64xf32>
    %171 = vector.broadcast %169 : vector<1x64xf32> to vector<8x64xf32>
    %172 = arith.mulf %170, %171 : vector<8x64xf32>
    %173 = vector.extract_strided_slice %99 {offsets = [0, 7], sizes = [8, 1], strides = [1, 1]} : vector<8x8xf32> to vector<8x1xf32>
    %174 = vector.extract_strided_slice %105 {offsets = [7, 0], sizes = [1, 64], strides = [1, 1]} : vector<8x64xf32> to vector<1x64xf32>
    %175 = vector.broadcast %173 : vector<8x1xf32> to vector<8x64xf32>
    %176 = vector.broadcast %174 : vector<1x64xf32> to vector<8x64xf32>
    %177 = arith.mulf %175, %176 : vector<8x64xf32>
    %178 = arith.mulf %109, %92 : vector<8x64xf32>
    %179 = arith.addf %178, %142 : vector<8x64xf32>
    %180 = vector.extract_strided_slice %100 {offsets = [0, 0], sizes = [8, 1], strides = [1, 1]} : vector<8x8xf32> to vector<8x1xf32>
    %181 = vector.broadcast %180 : vector<8x1xf32> to vector<8x64xf32>
    %182 = arith.mulf %181, %179 : vector<8x64xf32>
    %cst_59 = arith.constant dense<0.000000e+00> : vector<64xf32>
    %183 = vector.multi_reduction <add>, %182, %cst_59 [0] : vector<8x64xf32> to vector<64xf32>
    %184 = vector.shape_cast %183 : vector<64xf32> to vector<1x64xf32>
    %185 = arith.mulf %113, %179 : vector<8x64xf32>
    %186 = arith.addf %185, %147 : vector<8x64xf32>
    %187 = vector.extract_strided_slice %100 {offsets = [0, 1], sizes = [8, 1], strides = [1, 1]} : vector<8x8xf32> to vector<8x1xf32>
    %188 = vector.broadcast %187 : vector<8x1xf32> to vector<8x64xf32>
    %189 = arith.mulf %188, %186 : vector<8x64xf32>
    %cst_60 = arith.constant dense<0.000000e+00> : vector<64xf32>
    %190 = vector.multi_reduction <add>, %189, %cst_60 [0] : vector<8x64xf32> to vector<64xf32>
    %191 = vector.shape_cast %190 : vector<64xf32> to vector<1x64xf32>
    %192 = arith.mulf %117, %186 : vector<8x64xf32>
    %193 = arith.addf %192, %152 : vector<8x64xf32>
    %194 = vector.extract_strided_slice %100 {offsets = [0, 2], sizes = [8, 1], strides = [1, 1]} : vector<8x8xf32> to vector<8x1xf32>
    %195 = vector.broadcast %194 : vector<8x1xf32> to vector<8x64xf32>
    %196 = arith.mulf %195, %193 : vector<8x64xf32>
    %cst_61 = arith.constant dense<0.000000e+00> : vector<64xf32>
    %197 = vector.multi_reduction <add>, %196, %cst_61 [0] : vector<8x64xf32> to vector<64xf32>
    %198 = vector.shape_cast %197 : vector<64xf32> to vector<1x64xf32>
    %199 = arith.mulf %121, %193 : vector<8x64xf32>
    %200 = arith.addf %199, %157 : vector<8x64xf32>
    %201 = vector.extract_strided_slice %100 {offsets = [0, 3], sizes = [8, 1], strides = [1, 1]} : vector<8x8xf32> to vector<8x1xf32>
    %202 = vector.broadcast %201 : vector<8x1xf32> to vector<8x64xf32>
    %203 = arith.mulf %202, %200 : vector<8x64xf32>
    %cst_62 = arith.constant dense<0.000000e+00> : vector<64xf32>
    %204 = vector.multi_reduction <add>, %203, %cst_62 [0] : vector<8x64xf32> to vector<64xf32>
    %205 = vector.shape_cast %204 : vector<64xf32> to vector<1x64xf32>
    %206 = arith.mulf %125, %200 : vector<8x64xf32>
    %207 = arith.addf %206, %162 : vector<8x64xf32>
    %208 = vector.extract_strided_slice %100 {offsets = [0, 4], sizes = [8, 1], strides = [1, 1]} : vector<8x8xf32> to vector<8x1xf32>
    %209 = vector.broadcast %208 : vector<8x1xf32> to vector<8x64xf32>
    %210 = arith.mulf %209, %207 : vector<8x64xf32>
    %cst_63 = arith.constant dense<0.000000e+00> : vector<64xf32>
    %211 = vector.multi_reduction <add>, %210, %cst_63 [0] : vector<8x64xf32> to vector<64xf32>
    %212 = vector.shape_cast %211 : vector<64xf32> to vector<1x64xf32>
    %213 = arith.mulf %129, %207 : vector<8x64xf32>
    %214 = arith.addf %213, %167 : vector<8x64xf32>
    %215 = vector.extract_strided_slice %100 {offsets = [0, 5], sizes = [8, 1], strides = [1, 1]} : vector<8x8xf32> to vector<8x1xf32>
    %216 = vector.broadcast %215 : vector<8x1xf32> to vector<8x64xf32>
    %217 = arith.mulf %216, %214 : vector<8x64xf32>
    %cst_64 = arith.constant dense<0.000000e+00> : vector<64xf32>
    %218 = vector.multi_reduction <add>, %217, %cst_64 [0] : vector<8x64xf32> to vector<64xf32>
    %219 = vector.shape_cast %218 : vector<64xf32> to vector<1x64xf32>
    %220 = arith.mulf %133, %214 : vector<8x64xf32>
    %221 = arith.addf %220, %172 : vector<8x64xf32>
    %222 = vector.extract_strided_slice %100 {offsets = [0, 6], sizes = [8, 1], strides = [1, 1]} : vector<8x8xf32> to vector<8x1xf32>
    %223 = vector.broadcast %222 : vector<8x1xf32> to vector<8x64xf32>
    %224 = arith.mulf %223, %221 : vector<8x64xf32>
    %cst_65 = arith.constant dense<0.000000e+00> : vector<64xf32>
    %225 = vector.multi_reduction <add>, %224, %cst_65 [0] : vector<8x64xf32> to vector<64xf32>
    %226 = vector.shape_cast %225 : vector<64xf32> to vector<1x64xf32>
    %227 = arith.mulf %137, %221 : vector<8x64xf32>
    %228 = arith.addf %227, %177 : vector<8x64xf32>
    %229 = vector.extract_strided_slice %100 {offsets = [0, 7], sizes = [8, 1], strides = [1, 1]} : vector<8x8xf32> to vector<8x1xf32>
    %230 = vector.broadcast %229 : vector<8x1xf32> to vector<8x64xf32>
    %231 = arith.mulf %230, %228 : vector<8x64xf32>
    %cst_66 = arith.constant dense<0.000000e+00> : vector<64xf32>
    %232 = vector.multi_reduction <add>, %231, %cst_66 [0] : vector<8x64xf32> to vector<64xf32>
    %233 = vector.shape_cast %232 : vector<64xf32> to vector<1x64xf32>
    %234 = tpu.concatenate %184, %191, %198, %205, %212, %219, %226, %233 in 0 : vector<1x64xf32>, vector<1x64xf32>, vector<1x64xf32>, vector<1x64xf32>, vector<1x64xf32>, vector<1x64xf32>, vector<1x64xf32>, vector<1x64xf32> -> vector<8x64xf32>
    %235 = arith.index_cast %94 : i32 to index
    %c0_67 = arith.constant 0 : index
    %236 = vector.load %arg21[%235, %c0_67] : memref<8x64xf32, #tpu.memory_space<vmem>>, vector<8x64xf32>
    tpu.vector_store %arg21[%235, %c0_67], %234 {strides = array<i32>} : memref<8x64xf32, #tpu.memory_space<vmem>>, vector<8x64xf32>,
    %c1_i32 = arith.constant 1 : i32
    %c0_68 = arith.constant 0 : index
    %c0_69 = arith.constant 0 : index
    %237 = vector.load %arg17[%c0_68, %c0_69] : memref<8x64xf32, #tpu.memory_space<vmem>>, vector<8x64xf32>
    tpu.vector_store %arg17[%c0_68, %c0_69], %228 {strides = array<i32>} : memref<8x64xf32, #tpu.memory_space<vmem>>, vector<8x64xf32>,
    %c0_70 = arith.constant 0 : index
    %c0_71 = arith.constant 0 : index
    %238 = vector.load %arg21[%c0_70, %c0_71] : memref<8x64xf32, #tpu.memory_space<vmem>>, vector<8x64xf32>
    %c0_72 = arith.constant 0 : index
    %c0_73 = arith.constant 0 : index
    %239 = vector.load %arg19[%c0_72, %c0_73] : memref<8x64xf32, #tpu.memory_space<vmem>>, vector<8x64xf32>
    %c0_74 = arith.constant 0 : index
    %c0_75 = arith.constant 0 : index
    %240 = vector.load %arg13[%c0_74, %c0_75] : memref<1x64xf32, #tpu.memory_space<vmem>>, vector<1x64xf32>
    %241 = vector.broadcast %240 : vector<1x64xf32> to vector<8x64xf32>
    %242 = arith.mulf %239, %241 : vector<8x64xf32>
    %243 = arith.addf %238, %242 : vector<8x64xf32>
    %c0_76 = arith.constant 0 : index
    %c0_77 = arith.constant 0 : index
    %244 = vector.load %arg20[%c0_76, %c0_77] : memref<8x64xf32, #tpu.memory_space<vmem>>, vector<8x64xf32>
    %245 = arith.mulf %243, %244 : vector<8x64xf32>
    %246 = arith.truncf %245 : vector<8x64xf32> to vector<8x64xbf16>
    %c0_78 = arith.constant 0 : index
    %c0_79 = arith.constant 0 : index
    %247 = vector.load %arg14[%c0_78, %c0_79] : memref<64x32xbf16, #tpu.memory_space<vmem>>, vector<64x32xbf16>
    %cst_80 = arith.constant dense<0.000000e+00> : vector<8x32xf32>
    %248 = tpu.matmul %246, %247, %cst_80 {dimension_numbers = #tpu.dot_dimension_numbers<[1], [0], [0], [1], [0, 0, 1, 1], [], []>} : vector<8x64xbf16>, vector<64x32xbf16>, vector<8x32xf32> -> vector<8x32xf32>
    %c0_81 = arith.constant 0 : index
    %c0_82 = arith.constant 0 : index
    %c0_83 = arith.constant 0 : index
    %249 = vector.load %arg15[%c0_81, %c0_82, %c0_83] : memref<1x8x32xf32, #tpu.memory_space<vmem>>, vector<1x8x32xf32>
    %250 = vector.shape_cast %249 : vector<1x8x32xf32> to vector<8x32xf32>
    %251 = vector.shape_cast %248 : vector<8x32xf32> to vector<1x8x32xf32>
    tpu.vector_store %arg15[%c0_81, %c0_82, %c0_83], %251 {strides = array<i32>} : memref<1x8x32xf32, #tpu.memory_space<vmem>>, vector<1x8x32xf32>,
    return
  }
  func.func @transform_0(%arg0: i32, %arg1: i32) -> (i32, i32, i32) {
    %c0_i32 = arith.constant 0 : i32
    %c0_i32_0 = arith.constant 0 : i32
    return %arg0, %arg1, %c0_i32 : i32, i32, i32
  }
  func.func @transform_1(%arg0: i32, %arg1: i32) -> (i32, i32) {
    %c0_i32 = arith.constant 0 : i32
    %c0_i32_0 = arith.constant 0 : i32
    %c0_i32_1 = arith.constant 0 : i32
    return %c0_i32, %c0_i32_0 : i32, i32
  }
  func.func @transform_2(%arg0: i32, %arg1: i32) -> (i32, i32) {
    %c0_i32 = arith.constant 0 : i32
    %c0_i32_0 = arith.constant 0 : i32
    %c0_i32_1 = arith.constant 0 : i32
    return %c0_i32, %c0_i32_0 : i32, i32
  }
  func.func @transform_3(%arg0: i32, %arg1: i32) -> (i32, i32) {
    %c0_i32 = arith.constant 0 : i32
    %c0_i32_0 = arith.constant 0 : i32
    %c0_i32_1 = arith.constant 0 : i32
    return %c0_i32, %c0_i32_0 : i32, i32
  }
  func.func @transform_4(%arg0: i32, %arg1: i32) -> (i32, i32) {
    %c0_i32 = arith.constant 0 : i32
    %c0_i32_0 = arith.constant 0 : i32
    %c0_i32_1 = arith.constant 0 : i32
    return %c0_i32, %c0_i32_0 : i32, i32
  }
  func.func @transform_5(%arg0: i32, %arg1: i32) -> (i32, i32) {
    %c0_i32 = arith.constant 0 : i32
    %c0_i32_0 = arith.constant 0 : i32
    %c0_i32_1 = arith.constant 0 : i32
    return %c0_i32, %c0_i32_0 : i32, i32
  }
  func.func @transform_6(%arg0: i32, %arg1: i32) -> (i32, i32) {
    %c0_i32 = arith.constant 0 : i32
    %c0_i32_0 = arith.constant 0 : i32
    %c0_i32_1 = arith.constant 0 : i32
    return %c0_i32, %c0_i32_0 : i32, i32
  }
  func.func @transform_7(%arg0: i32, %arg1: i32) -> (i32, i32) {
    %c0_i32 = arith.constant 0 : i32
    %c0_i32_0 = arith.constant 0 : i32
    %c0_i32_1 = arith.constant 0 : i32
    return %c0_i32, %c0_i32_0 : i32, i32
  }
  func.func @transform_8(%arg0: i32, %arg1: i32) -> (i32, i32) {
    %c0_i32 = arith.constant 0 : i32
    %c0_i32_0 = arith.constant 0 : i32
    %c0_i32_1 = arith.constant 0 : i32
    return %c0_i32, %c0_i32_0 : i32, i32
  }
  func.func @transform_9(%arg0: i32, %arg1: i32) -> (i32, i32) {
    %c0_i32 = arith.constant 0 : i32
    %c0_i32_0 = arith.constant 0 : i32
    %c0_i32_1 = arith.constant 0 : i32
    return %c0_i32, %c0_i32_0 : i32, i32
  }
  func.func @transform_10(%arg0: i32, %arg1: i32) -> (i32, i32) {
    %c0_i32 = arith.constant 0 : i32
    %c0_i32_0 = arith.constant 0 : i32
    %c0_i32_1 = arith.constant 0 : i32
    return %c0_i32, %c0_i32_0 : i32, i32
  }
  func.func @transform_11(%arg0: i32, %arg1: i32) -> (i32, i32) {
    %c0_i32 = arith.constant 0 : i32
    %c0_i32_0 = arith.constant 0 : i32
    %c0_i32_1 = arith.constant 0 : i32
    return %c0_i32, %c0_i32_0 : i32, i32
  }
  func.func @transform_12(%arg0: i32, %arg1: i32) -> (i32, i32) {
    %c0_i32 = arith.constant 0 : i32
    %c0_i32_0 = arith.constant 0 : i32
    %c0_i32_1 = arith.constant 0 : i32
    return %c0_i32, %c0_i32_0 : i32, i32
  }
  func.func @transform_13(%arg0: i32, %arg1: i32) -> (i32, i32, i32) {
    %c0_i32 = arith.constant 0 : i32
    %c0_i32_0 = arith.constant 0 : i32
    return %arg0, %arg1, %c0_i32 : i32, i32, i32
  }
}

</mosaic_0001>

<llo_original>
// kernel: tpu_custom_call.1
$region0: #{tpu_custom_call.1}
  #allocation0 [shape = 'u32[]', space=smem, size = 0x4, offset = 0x4, fixed_abs, tag = 'smem constant byte address 0x4 - core index']
  #allocation1 [shape = 'u32[144,128]{1,0:T(1,128)}', space=vmem, size = 0x12000, scoped, tag = 'internal scratch']
  #allocation2 [shape = 'f32[16,64]{1,0:T(8,128)}', space=vmem, size = 0x2000, scoped, tag = 'scratch operand']
  #allocation3 [shape = 'f32[8,64]{1,0:T(8,128)}', space=vmem, size = 0x1000, scoped, tag = 'scratch operand']
  #allocation4 [shape = 'f32[8,64]{1,0:T(8,128)}', space=vmem, size = 0x1000, scoped, tag = 'scratch operand']
  #allocation5 [shape = 'f32[8,64]{1,0:T(8,128)}', space=vmem, size = 0x1000, scoped, tag = 'scratch operand']
  #allocation6 [shape = 'f32[8,64]{1,0:T(8,128)}', space=vmem, size = 0x1000, scoped, tag = 'scratch operand']
  #allocation7 [shape = 'f32[8,64]{1,0:T(8,128)}', space=vmem, size = 0x1000, scoped, tag = 'scratch operand']
  #allocation8 [shape = 'f32[8,8]{1,0:T(8,128)}', space=vmem, size = 0x1000, scoped, tag = 'scratch operand']
  #allocation9 [shape = 'f32[8,8]{1,0:T(8,128)}', space=vmem, size = 0x1000, scoped, tag = 'scratch operand']
  %s0 = inlined_call_operand.vmem [shape: f32[2,8,32], index: 0, kind: input, shape index: {}]
  %s1 = inlined_call_operand.vmem [shape: bf16[32,64], index: 1, kind: input, shape index: {}]
  %s2 = inlined_call_operand.vmem [shape: bf16[32,64], index: 2, kind: input, shape index: {}]
  %s3 = inlined_call_operand.vmem [shape: f32[4,64], index: 3, kind: input, shape index: {}]
  %s4 = inlined_call_operand.vmem [shape: f32[1,64], index: 4, kind: input, shape index: {}]
  %s5 = inlined_call_operand.vmem [shape: bf16[64,2], index: 5, kind: input, shape index: {}]
  %s6 = inlined_call_operand.vmem [shape: bf16[64,8], index: 6, kind: input, shape index: {}]
  %s7 = inlined_call_operand.vmem [shape: bf16[64,8], index: 7, kind: input, shape index: {}]
  %s8 = inlined_call_operand.vmem [shape: f32[2,64], index: 8, kind: input, shape index: {}]
  %s9 = inlined_call_operand.vmem [shape: f32[1,64], index: 9, kind: input, shape index: {}]
  %s10 = inlined_call_operand.vmem [shape: f32[8,64], index: 10, kind: input, shape index: {}]
  %s11 = inlined_call_operand.vmem [shape: f32[1,64], index: 11, kind: input, shape index: {}]
  %s12 = inlined_call_operand.vmem [shape: bf16[64,32], index: 12, kind: input, shape index: {}]
  %s13 = inlined_call_operand.hbm [shape: f32[2,8,32], index: 13, kind: output, shape index: {}]
  %s14 = sld [smem:[#allocation0]]
  $region93: #{tpu_custom_call.1} parent=0
    _
  %s16 = ssub.s32 1, %s14
  %s17 = scalar_select 0, %s16, %s14
  $region1: #{tpu_custom_call.1} parent=0
    #allocation10 [shape = 'u8[8192]{0}', space=vmem, size = 0x2000, scoped, tag = 'output window, operand 0']
    #allocation11 [shape = 's32[2]{0}', space=sflag, size = 0x8, scoped, tag = 'scoped memory for tpu_custom_call.1']
    %18 = vsyncpa [#allocation11], 0
    %s19 = scalar_lea.sflag [#allocation11], 1
    %20 = vsyncpa %s19, 0
    loop: start=0, step=1, limit=4
    $region2: #{tpu_custom_call.1} parent=1 // loop_pre_header
      _
    $region3: #{tpu_custom_call.1} parent=1 // loop_header
      %s22 = sphi 0, %s26
      %p23 = scmp.ge.s32.totalorder %s22, 4
      %s29 = sphi 0, %s41
      %s30 = sphi 0, %s37
      %s31 = sphi 0, %s29
      %s32 = sphi 0, %s30
      %s33 = sphi 0, %s31
      %s34 = sphi 0, %s32
      %s46 = sphi 0, %s48
      %s49 = sphi 0, %s46
      %s50 = sphi 0, %s49
      %s66 = sphi 0, %s50
      %s70 = sphi 0, %s70
      %s72 = sphi 0, %s70
      %s73 = sphi 0, %s72
      %s87 = sphi 0, %s73
      %s91 = sphi 0, %s91
      %s93 = sphi 0, %s91
      %s94 = sphi 0, %s93
      %s108 = sphi 0, %s94
      %s112 = sphi 0, %s112
      %s114 = sphi 0, %s112
      %s115 = sphi 0, %s114
      %s129 = sphi 0, %s115
      %s133 = sphi 0, %s133
      %s135 = sphi 0, %s133
      %s136 = sphi 0, %s135
      %s150 = sphi 0, %s136
      %s154 = sphi 0, %s154
      %s156 = sphi 0, %s154
      %s157 = sphi 0, %s156
      %s171 = sphi 0, %s157
      %s175 = sphi 0, %s175
      %s177 = sphi 0, %s175
      %s178 = sphi 0, %s177
      %s192 = sphi 0, %s178
      %s196 = sphi 0, %s196
      %s198 = sphi 0, %s196
      %s199 = sphi 0, %s198
      %s213 = sphi 0, %s199
      %s217 = sphi 0, %s217
      %s219 = sphi 0, %s217
      %s220 = sphi 0, %s219
      %s234 = sphi 0, %s220
      %s238 = sphi 0, %s238
      %s240 = sphi 0, %s238
      %s241 = sphi 0, %s240
      %s255 = sphi 0, %s241
      %s259 = sphi 0, %s259
      %s261 = sphi 0, %s259
      %s262 = sphi 0, %s261
      %s276 = sphi 0, %s262
      %s280 = sphi 0, %s280
      %s282 = sphi 0, %s280
      %s283 = sphi 0, %s282
      %s297 = sphi 0, %s283
      %s301 = sphi 0, %s301
      %s303 = sphi 0, %s301
      %s304 = sphi 0, %s303
      %s318 = sphi 0, %s304
      %s326 = sphi 0, %s328
      %s329 = sphi 0, %s326
      %s330 = sphi 0, %s329
      %s346 = sphi 0, %s330
    $region4: #{tpu_custom_call.1} parent=1 // loop_header_branch
      %25 = sbr.rel (%p23) target = $region8
    $region5: #{tpu_custom_call.1} parent=1 // loop_body
      %s27 = ssub.s32 %s22, 1
      %s28 = ssub.s32 %s22, 2
      %s35 = sadd.s32 1, %s30
      %p36 = scmp.ge.s32.totalorder %s35, 1
      %s37 = scalar_select %p36, 0, %s35
      %s38 = sadd.s32 1, %s29
      %s39 = scalar_select %p36, %s38, %s29
      %p40 = scmp.ge.s32.totalorder %s39, 2
      %s41 = scalar_select %p40, 0, %s39
      %s42 = ssub.s32 %s29, %s41
      %s43 = ssub.s32 %s30, %s37
      %s44 = sor.u32 %s42, %s43
      %p45 = scmp.eq.s32.totalorder %s44, 0
      %s47 = sadd.s32 %s46, 1
      %s48 = scalar_select %p45, %s46, %s47
      %p51 = pneg %p45
      %p52 = scmp.eq.s32.totalorder %s22, 1
      %p53 = por %p51, %p52
      %p54 = scmp.ne.s32.totalorder %s46, %s49
      %p55 = scmp.eq.s32.totalorder %s22, 0
      %p56 = por %p54, %p55
      %p57 = scmp.ne.s32.totalorder %s46, %s49
      %p58 = scmp.eq.s32.totalorder %s27, 1
      %p59 = por %p57, %p58
      %p60 = scmp.ne.s32.totalorder %s49, %s50
      %p61 = scmp.eq.s32.totalorder %s27, 0
      %p62 = por %p60, %p61
      %p63 = scmp.ne.s32.totalorder %s49, %s50
      %p64 = scmp.eq.s32.totalorder %s28, 1
      %p65 = por %p63, %p64
      %p67 = scmp.ne.s32.totalorder %s50, %s66
      %p68 = scmp.eq.s32.totalorder %s28, 0
      %p69 = por %p67, %p68
      %s71 = sadd.s32 %s70, 1
      %p74 = scmp.eq.s32.totalorder %s22, 1
      %p75 = scmp.ne.s32.totalorder %s70, %s72
      %p76 = scmp.eq.s32.totalorder %s22, 0
      %p77 = por %p75, %p76
      %p78 = scmp.ne.s32.totalorder %s70, %s72
      %p79 = scmp.eq.s32.totalorder %s27, 1
      %p80 = por %p78, %p79
      %p81 = scmp.ne.s32.totalorder %s72, %s73
      %p82 = scmp.eq.s32.totalorder %s27, 0
      %p83 = por %p81, %p82
      %p84 = scmp.ne.s32.totalorder %s72, %s73
      %p85 = scmp.eq.s32.totalorder %s28, 1
      %p86 = por %p84, %p85
      %p88 = scmp.ne.s32.totalorder %s73, %s87
      %p89 = scmp.eq.s32.totalorder %s28, 0
      %p90 = por %p88, %p89
      %s92 = sadd.s32 %s91, 1
      %p95 = scmp.eq.s32.totalorder %s22, 1
      %p96 = scmp.ne.s32.totalorder %s91, %s93
      %p97 = scmp.eq.s32.totalorder %s22, 0
      %p98 = por %p96, %p97
      %p99 = scmp.ne.s32.totalorder %s91, %s93
      %p100 = scmp.eq.s32.totalorder %s27, 1
      %p101 = por %p99, %p100
      %p102 = scmp.ne.s32.totalorder %s93, %s94
      %p103 = scmp.eq.s32.totalorder %s27, 0
      %p104 = por %p102, %p103
      %p105 = scmp.ne.s32.totalorder %s93, %s94
      %p106 = scmp.eq.s32.totalorder %s28, 1
      %p107 = por %p105, %p106
      %p109 = scmp.ne.s32.totalorder %s94, %s108
      %p110 = scmp.eq.s32.totalorder %s28, 0
      %p111 = por %p109, %p110
      %s113 = sadd.s32 %s112, 1
      %p116 = scmp.eq.s32.totalorder %s22, 1
      %p117 = scmp.ne.s32.totalorder %s112, %s114
      %p118 = scmp.eq.s32.totalorder %s22, 0
      %p119 = por %p117, %p118
      %p120 = scmp.ne.s32.totalorder %s112, %s114
      %p121 = scmp.eq.s32.totalorder %s27, 1
      %p122 = por %p120, %p121
      %p123 = scmp.ne.s32.totalorder %s114, %s115
      %p124 = scmp.eq.s32.totalorder %s27, 0
      %p125 = por %p123, %p124
      %p126 = scmp.ne.s32.totalorder %s114, %s115
      %p127 = scmp.eq.s32.totalorder %s28, 1
      %p128 = por %p126, %p127
      %p130 = scmp.ne.s32.totalorder %s115, %s129
      %p131 = scmp.eq.s32.totalorder %s28, 0
      %p132 = por %p130, %p131
      %s134 = sadd.s32 %s133, 1
      %p137 = scmp.eq.s32.totalorder %s22, 1
      %p138 = scmp.ne.s32.totalorder %s133, %s135
      %p139 = scmp.eq.s32.totalorder %s22, 0
      %p140 = por %p138, %p139
      %p141 = scmp.ne.s32.totalorder %s133, %s135
      %p142 = scmp.eq.s32.totalorder %s27, 1
      %p143 = por %p141, %p142
      %p144 = scmp.ne.s32.totalorder %s135, %s136
      %p145 = scmp.eq.s32.totalorder %s27, 0
      %p146 = por %p144, %p145
      %p147 = scmp.ne.s32.totalorder %s135, %s136
      %p148 = scmp.eq.s32.totalorder %s28, 1
      %p149 = por %p147, %p148
      %p151 = scmp.ne.s32.totalorder %s136, %s150
      %p152 = scmp.eq.s32.totalorder %s28, 0
      %p153 = por %p151, %p152
      %s155 = sadd.s32 %s154, 1
      %p158 = scmp.eq.s32.totalorder %s22, 1
      %p159 = scmp.ne.s32.totalorder %s154, %s156
      %p160 = scmp.eq.s32.totalorder %s22, 0
      %p161 = por %p159, %p160
      %p162 = scmp.ne.s32.totalorder %s154, %s156
      %p163 = scmp.eq.s32.totalorder %s27, 1
      %p164 = por %p162, %p163
      %p165 = scmp.ne.s32.totalorder %s156, %s157
      %p166 = scmp.eq.s32.totalorder %s27, 0
      %p167 = por %p165, %p166
      %p168 = scmp.ne.s32.totalorder %s156, %s157
      %p169 = scmp.eq.s32.totalorder %s28, 1
      %p170 = por %p168, %p169
      %p172 = scmp.ne.s32.totalorder %s157, %s171
      %p173 = scmp.eq.s32.totalorder %s28, 0
      %p174 = por %p172, %p173
      %s176 = sadd.s32 %s175, 1
      %p179 = scmp.eq.s32.totalorder %s22, 1
      %p180 = scmp.ne.s32.totalorder %s175, %s177
      %p181 = scmp.eq.s32.totalorder %s22, 0
      %p182 = por %p180, %p181
      %p183 = scmp.ne.s32.totalorder %s175, %s177
      %p184 = scmp.eq.s32.totalorder %s27, 1
      %p185 = por %p183, %p184
      %p186 = scmp.ne.s32.totalorder %s177, %s178
      %p187 = scmp.eq.s32.totalorder %s27, 0
      %p188 = por %p186, %p187
      %p189 = scmp.ne.s32.totalorder %s177, %s178
      %p190 = scmp.eq.s32.totalorder %s28, 1
      %p191 = por %p189, %p190
      %p193 = scmp.ne.s32.totalorder %s178, %s192
      %p194 = scmp.eq.s32.totalorder %s28, 0
      %p195 = por %p193, %p194
      %s197 = sadd.s32 %s196, 1
      %p200 = scmp.eq.s32.totalorder %s22, 1
      %p201 = scmp.ne.s32.totalorder %s196, %s198
      %p202 = scmp.eq.s32.totalorder %s22, 0
      %p203 = por %p201, %p202
      %p204 = scmp.ne.s32.totalorder %s196, %s198
      %p205 = scmp.eq.s32.totalorder %s27, 1
      %p206 = por %p204, %p205
      %p207 = scmp.ne.s32.totalorder %s198, %s199
      %p208 = scmp.eq.s32.totalorder %s27, 0
      %p209 = por %p207, %p208
      %p210 = scmp.ne.s32.totalorder %s198, %s199
      %p211 = scmp.eq.s32.totalorder %s28, 1
      %p212 = por %p210, %p211
      %p214 = scmp.ne.s32.totalorder %s199, %s213
      %p215 = scmp.eq.s32.totalorder %s28, 0
      %p216 = por %p214, %p215
      %s218 = sadd.s32 %s217, 1
      %p221 = scmp.eq.s32.totalorder %s22, 1
      %p222 = scmp.ne.s32.totalorder %s217, %s219
      %p223 = scmp.eq.s32.totalorder %s22, 0
      %p224 = por %p222, %p223
      %p225 = scmp.ne.s32.totalorder %s217, %s219
      %p226 = scmp.eq.s32.totalorder %s27, 1
      %p227 = por %p225, %p226
      %p228 = scmp.ne.s32.totalorder %s219, %s220
      %p229 = scmp.eq.s32.totalorder %s27, 0
      %p230 = por %p228, %p229
      %p231 = scmp.ne.s32.totalorder %s219, %s220
      %p232 = scmp.eq.s32.totalorder %s28, 1
      %p233 = por %p231, %p232
      %p235 = scmp.ne.s32.totalorder %s220, %s234
      %p236 = scmp.eq.s32.totalorder %s28, 0
      %p237 = por %p235, %p236
      %s239 = sadd.s32 %s238, 1
      %p242 = scmp.eq.s32.totalorder %s22, 1
      %p243 = scmp.ne.s32.totalorder %s238, %s240
      %p244 = scmp.eq.s32.totalorder %s22, 0
      %p245 = por %p243, %p244
      %p246 = scmp.ne.s32.totalorder %s238, %s240
      %p247 = scmp.eq.s32.totalorder %s27, 1
      %p248 = por %p246, %p247
      %p249 = scmp.ne.s32.totalorder %s240, %s241
      %p250 = scmp.eq.s32.totalorder %s27, 0
      %p251 = por %p249, %p250
      %p252 = scmp.ne.s32.totalorder %s240, %s241
      %p253 = scmp.eq.s32.totalorder %s28, 1
      %p254 = por %p252, %p253
      %p256 = scmp.ne.s32.totalorder %s241, %s255
      %p257 = scmp.eq.s32.totalorder %s28, 0
      %p258 = por %p256, %p257
      %s260 = sadd.s32 %s259, 1
      %p263 = scmp.eq.s32.totalorder %s22, 1
      %p264 = scmp.ne.s32.totalorder %s259, %s261
      %p265 = scmp.eq.s32.totalorder %s22, 0
      %p266 = por %p264, %p265
      %p267 = scmp.ne.s32.totalorder %s259, %s261
      %p268 = scmp.eq.s32.totalorder %s27, 1
      %p269 = por %p267, %p268
      %p270 = scmp.ne.s32.totalorder %s261, %s262
      %p271 = scmp.eq.s32.totalorder %s27, 0
      %p272 = por %p270, %p271
      %p273 = scmp.ne.s32.totalorder %s261, %s262
      %p274 = scmp.eq.s32.totalorder %s28, 1
      %p275 = por %p273, %p274
      %p277 = scmp.ne.s32.totalorder %s262, %s276
      %p278 = scmp.eq.s32.totalorder %s28, 0
      %p279 = por %p277, %p278
      %s281 = sadd.s32 %s280, 1
      %p284 = scmp.eq.s32.totalorder %s22, 1
      %p285 = scmp.ne.s32.totalorder %s280, %s282
      %p286 = scmp.eq.s32.totalorder %s22, 0
      %p287 = por %p285, %p286
      %p288 = scmp.ne.s32.totalorder %s280, %s282
      %p289 = scmp.eq.s32.totalorder %s27, 1
      %p290 = por %p288, %p289
      %p291 = scmp.ne.s32.totalorder %s282, %s283
      %p292 = scmp.eq.s32.totalorder %s27, 0
      %p293 = por %p291, %p292
      %p294 = scmp.ne.s32.totalorder %s282, %s283
      %p295 = scmp.eq.s32.totalorder %s28, 1
      %p296 = por %p294, %p295
      %p298 = scmp.ne.s32.totalorder %s283, %s297
      %p299 = scmp.eq.s32.totalorder %s28, 0
      %p300 = por %p298, %p299
      %s302 = sadd.s32 %s301, 1
      %p305 = scmp.eq.s32.totalorder %s22, 1
      %p306 = scmp.ne.s32.totalorder %s301, %s303
      %p307 = scmp.eq.s32.totalorder %s22, 0
      %p308 = por %p306, %p307
      %p309 = scmp.ne.s32.totalorder %s301, %s303
      %p310 = scmp.eq.s32.totalorder %s27, 1
      %p311 = por %p309, %p310
      %p312 = scmp.ne.s32.totalorder %s303, %s304
      %p313 = scmp.eq.s32.totalorder %s27, 0
      %p314 = por %p312, %p313
      %p315 = scmp.ne.s32.totalorder %s303, %s304
      %p316 = scmp.eq.s32.totalorder %s28, 1
      %p317 = por %p315, %p316
      %p319 = scmp.ne.s32.totalorder %s304, %s318
      %p320 = scmp.eq.s32.totalorder %s28, 0
      %p321 = por %p319, %p320
      %s322 = ssub.s32 %s29, %s41
      %s323 = ssub.s32 %s30, %s37
      %s324 = sor.u32 %s322, %s323
      %p325 = scmp.eq.s32.totalorder %s324, 0
      %s327 = sadd.s32 %s326, 1
      %s328 = scalar_select %p325, %s326, %s327
      %p331 = pneg %p325
      %p332 = scmp.eq.s32.totalorder %s22, 1
      %p333 = por %p331, %p332
      %p334 = scmp.ne.s32.totalorder %s326, %s329
      %p335 = scmp.eq.s32.totalorder %s22, 0
      %p336 = por %p334, %p335
      %p337 = scmp.ne.s32.totalorder %s326, %s329
      %p338 = scmp.eq.s32.totalorder %s27, 1
      %p339 = por %p337, %p338
      %p340 = scmp.ne.s32.totalorder %s329, %s330
      %p341 = scmp.eq.s32.totalorder %s27, 0
      %p342 = por %p340, %p341
      %p343 = scmp.ne.s32.totalorder %s329, %s330
      %p344 = scmp.eq.s32.totalorder %s28, 1
      %p345 = por %p343, %p344
      %p347 = scmp.ne.s32.totalorder %s330, %s346
      %p348 = scmp.eq.s32.totalorder %s28, 0
      %p349 = por %p347, %p348
      %p350 = scmp.le.s32.totalorder 1, %s22
      %p351 = scmp.lt.s32.totalorder %s22, 3
      %p352 = pnand %p350, %p351
      %p353 = pneg %p352
      // Predicated region
      $region9: #{tpu_custom_call.1} parent=5 // pred_check
        _
      $region10: #{tpu_custom_call.1} parent=5 // pred_check_branch
        %355 = sbr.rel (%p352) target = $region12
      $region11: #{tpu_custom_call.1} parent=5 // pred_region
        %s356 = ssub.s32 %s22, 1
        // Predicated region
        $region13: #{tpu_custom_call.1} parent=11 // pred_check
          %p357 = pneg %p83
        $region14: #{tpu_custom_call.1} parent=11 // pred_check_branch
          %359 = sbr.rel (%p357) target = $region16
        $region15: #{tpu_custom_call.1} parent=11 // pred_region
          _
        $region16: #{tpu_custom_call.1} parent=11 // pred_fallthru
          _
        // Predicated region
        $region17: #{tpu_custom_call.1} parent=11 // pred_check
          %p360 = pneg %p104
        $region18: #{tpu_custom_call.1} parent=11 // pred_check_branch
          %362 = sbr.rel (%p360) target = $region20
        $region19: #{tpu_custom_call.1} parent=11 // pred_region
          _
        $region20: #{tpu_custom_call.1} parent=11 // pred_fallthru
          _
        // Predicated region
        $region21: #{tpu_custom_call.1} parent=11 // pred_check
          %p363 = pneg %p125
        $region22: #{tpu_custom_call.1} parent=11 // pred_check_branch
          %365 = sbr.rel (%p363) target = $region24
        $region23: #{tpu_custom_call.1} parent=11 // pred_region
          _
        $region24: #{tpu_custom_call.1} parent=11 // pred_fallthru
          _
        // Predicated region
        $region25: #{tpu_custom_call.1} parent=11 // pred_check
          %p366 = pneg %p146
        $region26: #{tpu_custom_call.1} parent=11 // pred_check_branch
          %368 = sbr.rel (%p366) target = $region28
        $region27: #{tpu_custom_call.1} parent=11 // pred_region
          _
        $region28: #{tpu_custom_call.1} parent=11 // pred_fallthru
          _
        // Predicated region
        $region29: #{tpu_custom_call.1} parent=11 // pred_check
          %p369 = pneg %p167
        $region30: #{tpu_custom_call.1} parent=11 // pred_check_branch
          %371 = sbr.rel (%p369) target = $region32
        $region31: #{tpu_custom_call.1} parent=11 // pred_region
          _
        $region32: #{tpu_custom_call.1} parent=11 // pred_fallthru
          _
        // Predicated region
        $region33: #{tpu_custom_call.1} parent=11 // pred_check
          %p372 = pneg %p188
        $region34: #{tpu_custom_call.1} parent=11 // pred_check_branch
          %374 = sbr.rel (%p372) target = $region36
        $region35: #{tpu_custom_call.1} parent=11 // pred_region
          _
        $region36: #{tpu_custom_call.1} parent=11 // pred_fallthru
          _
        // Predicated region
        $region37: #{tpu_custom_call.1} parent=11 // pred_check
          %p375 = pneg %p209
        $region38: #{tpu_custom_call.1} parent=11 // pred_check_branch
          %377 = sbr.rel (%p375) target = $region40
        $region39: #{tpu_custom_call.1} parent=11 // pred_region
          _
        $region40: #{tpu_custom_call.1} parent=11 // pred_fallthru
          _
        // Predicated region
        $region41: #{tpu_custom_call.1} parent=11 // pred_check
          %p378 = pneg %p230
        $region42: #{tpu_custom_call.1} parent=11 // pred_check_branch
          %380 = sbr.rel (%p378) target = $region44
        $region43: #{tpu_custom_call.1} parent=11 // pred_region
          _
        $region44: #{tpu_custom_call.1} parent=11 // pred_fallthru
          _
        // Predicated region
        $region45: #{tpu_custom_call.1} parent=11 // pred_check
          %p381 = pneg %p251
        $region46: #{tpu_custom_call.1} parent=11 // pred_check_branch
          %383 = sbr.rel (%p381) target = $region48
        $region47: #{tpu_custom_call.1} parent=11 // pred_region
          _
        $region48: #{tpu_custom_call.1} parent=11 // pred_fallthru
          _
        // Predicated region
        $region49: #{tpu_custom_call.1} parent=11 // pred_check
          %p384 = pneg %p272
        $region50: #{tpu_custom_call.1} parent=11 // pred_check_branch
          %386 = sbr.rel (%p384) target = $region52
        $region51: #{tpu_custom_call.1} parent=11 // pred_region
          _
        $region52: #{tpu_custom_call.1} parent=11 // pred_fallthru
          _
        // Predicated region
        $region53: #{tpu_custom_call.1} parent=11 // pred_check
          %p387 = pneg %p293
        $region54: #{tpu_custom_call.1} parent=11 // pred_check_branch
          %389 = sbr.rel (%p387) target = $region56
        $region55: #{tpu_custom_call.1} parent=11 // pred_region
          _
        $region56: #{tpu_custom_call.1} parent=11 // pred_fallthru
          _
        // Predicated region
        $region57: #{tpu_custom_call.1} parent=11 // pred_check
          %p390 = pneg %p314
        $region58: #{tpu_custom_call.1} parent=11 // pred_check_branch
          %392 = sbr.rel (%p390) target = $region60
        $region59: #{tpu_custom_call.1} parent=11 // pred_region
          _
        $region60: #{tpu_custom_call.1} parent=11 // pred_fallthru
          _
      $region12: #{tpu_custom_call.1} parent=5 // pred_fallthru
        _
      %p393 = scmp.lt.s32.totalorder %s22, 2
      // Predicated region
      $region61: #{tpu_custom_call.1} parent=5 // pred_check
        %p394 = pneg %p393
      $region62: #{tpu_custom_call.1} parent=5 // pred_check_branch
        %396 = sbr.rel (%p394) target = $region64
      $region63: #{tpu_custom_call.1} parent=5 // pred_region
        // Predicated region
        $region65: #{tpu_custom_call.1} parent=63 // pred_check
          %p397 = pneg %p56
        $region66: #{tpu_custom_call.1} parent=63 // pred_check_branch
          %399 = sbr.rel (%p397) target = $region68
        $region67: #{tpu_custom_call.1} parent=63 // pred_region
          %p400 = scmp.lt.s32.totalorder %s29, 1
          %s401 = scalar_select %p400, %s29, 1
          %p402 = scmp.lt.s32.totalorder %s30, 0
          %s403 = scalar_select %p402, %s30, 0
          %s404 = sadd.s32 %s403, %s401
          %s405 = smul.addr %s404, 8
          %s406 = scalar_lea.vmem %s0, %s405
        $region68: #{tpu_custom_call.1} parent=63 // pred_fallthru
          _
      $region64: #{tpu_custom_call.1} parent=5 // pred_fallthru
        _
      %p407 = scmp.le.s32.totalorder 1, %s22
      %p408 = scmp.lt.s32.totalorder %s22, 3
      %p409 = pnand %p407, %p408
      %p410 = pneg %p409
      // Predicated region
      $region69: #{tpu_custom_call.1} parent=5 // pred_check
        _
      $region70: #{tpu_custom_call.1} parent=5 // pred_check_branch
        %412 = sbr.rel (%p409) target = $region72
      $region71: #{tpu_custom_call.1} parent=5 // pred_region
        %s413 = ssub.s32 %s22, 1
        %p414 = scmp.lt.s32.totalorder %s31, 1
        %s415 = scalar_select %p414, %s31, 1
        %p416 = scmp.lt.s32.totalorder %s32, 0
        %s417 = scalar_select %p416, %s32, 0
        %s418 = sadd.s32 %s417, %s415
        %s419 = smul.addr %s418, 8
        %s420 = scalar_lea.vmem %s0, %s419
        %p421 = pneg %p62
        %p422 = pneg %p59
        %p423 = pneg %p83
        %p424 = pneg %p80
        %p425 = pneg %p104
        %p426 = pneg %p101
        %p427 = pneg %p125
        %p428 = pneg %p122
        %p429 = pneg %p146
        %p430 = pneg %p143
        %p431 = pneg %p167
        %p432 = pneg %p164
        %p433 = pneg %p188
        %p434 = pneg %p185
        %p435 = pneg %p209
        %p436 = pneg %p206
        %p437 = pneg %p230
        %p438 = pneg %p227
        %p439 = pneg %p251
        %p440 = pneg %p248
        %p441 = pneg %p272
        %p442 = pneg %p269
        %p443 = pneg %p293
        %p444 = pneg %p290
        %p445 = pneg %p314
        %p446 = pneg %p311
        %p447 = pneg %p342
        %p448 = pneg %p339
        %s449 = sand.u32 %s329, 1
        %s450 = scalar_lea.sflag [#allocation11], %s449
        %s451 = sand.u32 %s329, 1
        %s452 = smul.addr %s451, 8
        %s453 = scalar_lea.vmem [#allocation10], %s452
        %p454 = scmp.lt.s32.totalorder %s31, 1
        %s455 = scalar_select %p454, %s31, 1
        %p456 = scmp.lt.s32.totalorder %s32, 0
        %s457 = scalar_select %p456, %s32, 0
        %s458 = sadd.s32 %s457, %s455
        %s459 = smul.addr %s458, 8
        %s460 = scalar_lea.vmem %s0, %s459
        %p462 = scmp.eq.s32.totalorder %s32, 0
        // Predicated region
        $region73: #{tpu_custom_call.1} parent=71 // pred_check
          %p463 = pneg %p462
        $region74: #{tpu_custom_call.1} parent=71 // pred_check_branch
          %465 = sbr.rel (%p463) target = $region76
        $region75: #{tpu_custom_call.1} parent=71 // pred_region
          %vm466 = vcmask 523264
          %467 = vst.msk [vmem:[#allocation3] sm:$0xff] %vm466, 0.0
          %vm468 = vcmask 518144
          %469 = vst.msk [vmem:[#allocation2 + $0x5] sm:$0x7] %vm468, 0.0
        $region76: #{tpu_custom_call.1} parent=71 // pred_fallthru
          _
        %p470 = scmp.gt.s32.totalorder %s32, 0
        // Predicated region
        $region77: #{tpu_custom_call.1} parent=71 // pred_check
          %p471 = pneg %p470
        $region78: #{tpu_custom_call.1} parent=71 // pred_check_branch
          %473 = sbr.rel (%p471) target = $region80
        $region79: #{tpu_custom_call.1} parent=71 // pred_region
          %v474 = vld [vmem:[#allocation2 + $0xd] sm:$0x7]
          %vm475 = vcmask 518144
          %476 = vst.msk [vmem:[#allocation2 + $0x5] sm:$0x7] %vm475, %v474
        $region80: #{tpu_custom_call.1} parent=71 // pred_fallthru
          _
        %v477 = vld [vmem:[%s460] sm:$0xff]
        %v478 = vpack.c.bf16 %v477, %v477
        %v479 = vld [vmem:[%s1] sm:$0xf]
        %v480 = vld [vmem:[%s1 + $0x4] sm:$0xf]
        %v481 = vld [vmem:[%s1 + $0x8] sm:$0xf]
        %v482 = vld [vmem:[%s1 + $0xc] sm:$0xf]
        %v487 = vunpack.c.l.b16 %v479
        %v488 = vunpack.c.l.b16 %v480
        %v489 = vunpack.c.l.b16 %v481
        %v490 = vunpack.c.l.b16 %v482
        %v491 = vpack.c.b16 %v488, %v487
        %v492 = vpack.c.b16 %v490, %v489
        %vm495 = vcmask 261120
        %v497 = vsel %vm495, %v478, 0
        %499 = vmatprep.subr.bf16.mxu0 0
        %500 = vmatpush1.bf16.msra.mxu0 %v491
        %501 = vmatprep.subr.bf16.mxu0 0
        %502 = vmatpush1.bf16.msra.mxu0 %v492
        %503 = vmatprep.subr.bf16.mxu0 0
        %504 = vmatpush1.bf16.msra.mxu0 0
        %505 = vmatprep.subr.bf16.mxu0 0
        %506 = vmatpush1.bf16.msra.mxu0 0
        %507 = vmatprep.subr.bf16.mxu0 0
        %508 = vmatpush1.bf16.msra.mxu0 0
        %509 = vmatprep.subr.bf16.mxu0 0
        %510 = vmatpush1.bf16.msra.mxu0 0
        %511 = vmatprep.subr.bf16.mxu0 0
        %512 = vmatpush1.bf16.msra.mxu0 0
        %513 = vmatprep.subr.bf16.mxu0 0
        %514 = vmatpush1.bf16.msra.mxu0 0
        %515 = vmatprep.subr.bf16.mxu0 0
        %516 = vmatpush1.bf16.msra.mxu0 0
        %517 = vmatprep.subr.bf16.mxu0 0
        %518 = vmatpush1.bf16.msra.mxu0 0
        %519 = vmatprep.subr.bf16.mxu0 0
        %520 = vmatpush1.bf16.msra.mxu0 0
        %521 = vmatprep.subr.bf16.mxu0 0
        %522 = vmatpush1.bf16.msra.mxu0 0
        %523 = vmatprep.subr.bf16.mxu0 0
        %524 = vmatpush1.bf16.msra.mxu0 0
        %525 = vmatprep.subr.bf16.mxu0 0
        %526 = vmatpush1.bf16.msra.mxu0 0
        %527 = vmatprep.subr.bf16.mxu0 0
        %528 = vmatpush1.bf16.msra.mxu0 0
        %529 = vmatprep.subr.bf16.mxu0 0
        %530 = vmatpush1.bf16.msra.mxu0 0
        %531 = vmatprep.mubr.bf16.mxu0 0
        %532 = vmatmul.mubr.bf16.gmra.mrb[0].mxu0 %v497
        %v533 = vpop.f32.mrb[0].mxu0
        %v534 = vadd.f32 0.0, %v533
        %v535 = vpop.f32.mrb[0].mxu0
        %v536 = vpop.f32.mrb[0].mxu0
        %v537 = vpop.f32.mrb[0].mxu0
        %538 = vdwg.mxu0
        %v539 = vld [vmem:[%s2] sm:$0xf]
        %v540 = vld [vmem:[%s2 + $0x4] sm:$0xf]
        %v541 = vld [vmem:[%s2 + $0x8] sm:$0xf]
        %v542 = vld [vmem:[%s2 + $0xc] sm:$0xf]
        %v547 = vunpack.c.l.b16 %v539
        %v548 = vunpack.c.l.b16 %v540
        %v549 = vunpack.c.l.b16 %v541
        %v550 = vunpack.c.l.b16 %v542
        %v551 = vpack.c.b16 %v548, %v547
        %v552 = vpack.c.b16 %v550, %v549
        %555 = vmatprep.subr.bf16.mxu0 0
        %556 = vmatpush1.bf16.msra.mxu0 %v551
        %557 = vmatprep.subr.bf16.mxu0 0
        %558 = vmatpush1.bf16.msra.mxu0 %v552
        %559 = vmatprep.subr.bf16.mxu0 0
        %560 = vmatpush1.bf16.msra.mxu0 0
        %561 = vmatprep.subr.bf16.mxu0 0
        %562 = vmatpush1.bf16.msra.mxu0 0
        %563 = vmatprep.subr.bf16.mxu0 0
        %564 = vmatpush1.bf16.msra.mxu0 0
        %565 = vmatprep.subr.bf16.mxu0 0
        %566 = vmatpush1.bf16.msra.mxu0 0
        %567 = vmatprep.subr.bf16.mxu0 0
        %568 = vmatpush1.bf16.msra.mxu0 0
        %569 = vmatprep.subr.bf16.mxu0 0
        %570 = vmatpush1.bf16.msra.mxu0 0
        %571 = vmatprep.subr.bf16.mxu0 0
        %572 = vmatpush1.bf16.msra.mxu0 0
        %573 = vmatprep.subr.bf16.mxu0 0
        %574 = vmatpush1.bf16.msra.mxu0 0
        %575 = vmatprep.subr.bf16.mxu0 0
        %576 = vmatpush1.bf16.msra.mxu0 0
        %577 = vmatprep.subr.bf16.mxu0 0
        %578 = vmatpush1.bf16.msra.mxu0 0
        %579 = vmatprep.subr.bf16.mxu0 0
        %580 = vmatpush1.bf16.msra.mxu0 0
        %581 = vmatprep.subr.bf16.mxu0 0
        %582 = vmatpush1.bf16.msra.mxu0 0
        %583 = vmatprep.subr.bf16.mxu0 0
        %584 = vmatpush1.bf16.msra.mxu0 0
        %585 = vmatprep.subr.bf16.mxu0 0
        %586 = vmatpush1.bf16.msra.mxu0 0
        %587 = vmatprep.mubr.bf16.mxu0 0
        %588 = vmatmul.mubr.bf16.gmra.mrb[0].mxu0 %v497
        %v589 = vpop.f32.mrb[0].mxu0
        %v590 = vadd.f32 0.0, %v589
        %v591 = vpop.f32.mrb[0].mxu0
        %v592 = vpop.f32.mrb[0].mxu0
        %v593 = vpop.f32.mrb[0].mxu0
        %594 = vdwg.mxu0
        %v595 = vxor.u32 %v590, 2147483648
        %v596 = vmul.f32 %v595, 1.442695
        %v597 = vpow.pop %v596
        %v598 = vadd.f32 %v597, 1.0
        %v599 = vrcp.pop %v598
        %v600 = vmul.f32 1.0, %v599
        %v601 = vmul.f32 %v590, %v600
        %vm602 = vcmask 523264
        %603 = vst.msk [vmem:[#allocation6] sm:$0xff] %vm602, %v601
        %604 = vst.msk [vmem:[#allocation2 + $0x8] sm:$0xff] %vm602, %v534
        %v605 = vld [vmem:[%s3] sm:$0xf]
        %v606 = vlaneseq
        %v607 = vshrl.u32 %v606, 7
        %v608 = vsub.s32 3, %v607
        %v609 = vrot.slane %v605, %v608
        %v610 = vmul.f32 %v534, %v609
        %v611 = vld [vmem:[%s4] sm:$0x1]
        %v613 = vlaneseq
        %v614 = vshrl.u32 %v613, 7
        %v615 = vsub.s32 0, %v614
        %v616 = vrot.slane %v611, %v615
        %v618 = vadd.f32 %v610, %v616
        %v619 = vld [vmem:[#allocation2] sm:$0xff]
        %v620 = vld [vmem:[#allocation2 + $0x8] sm:$0xff]
        %v621 = vlaneseq
        %v622 = vshrl.u32 %v621, 7
        %v623 = vsub.s32 0, %v622
        %v624 = vrot.slane %v605, %v623
        %v625 = vmul.f32 %v619, %v624
        %v626 = vmul.f32 %v620, %v624
        %vm629 = vcmask 1042432
        %v630 = vrot.slane %v625, 5
        %v631 = vrot.slane %v626, 5
        %v632 = vsel %vm629, %v630, %v631
        %v634 = vadd.f32 %v618, %v632
        %v635 = vlaneseq
        %v636 = vshrl.u32 %v635, 7
        %v637 = vsub.s32 1, %v636
        %v638 = vrot.slane %v605, %v637
        %v639 = vmul.f32 %v619, %v638
        %v640 = vmul.f32 %v620, %v638
        %vm643 = vcmask 1041408
        %v644 = vrot.slane %v639, 6
        %v645 = vrot.slane %v640, 6
        %v646 = vsel %vm643, %v644, %v645
        %v648 = vadd.f32 %v634, %v646
        %v649 = vlaneseq
        %v650 = vshrl.u32 %v649, 7
        %v651 = vsub.s32 2, %v650
        %v652 = vrot.slane %v605, %v651
        %v653 = vmul.f32 %v619, %v652
        %v654 = vmul.f32 %v620, %v652
        %vm657 = vcmask 1040384
        %v658 = vrot.slane %v653, 7
        %v659 = vrot.slane %v654, 7
        %v660 = vsel %vm657, %v658, %v659
        %v662 = vadd.f32 %v648, %v660
        %v663 = vxor.u32 %v662, 2147483648
        %v664 = vmul.f32 %v663, 1.442695
        %v665 = vpow.pop %v664
        %v666 = vadd.f32 %v665, 1.0
        %v667 = vrcp.pop %v666
        %v668 = vmul.f32 1.0, %v667
        %v669 = vmul.f32 %v662, %v668
        %670 = vst.msk [vmem:[#allocation5] sm:$0xff] %vm602, %v669
        %v671 = vpack.c.bf16 %v669, %v669
        %v672 = vld [vmem:[%s5] sm:$0xf]
        %v673 = vld [vmem:[%s5 + $0x4] sm:$0xf]
        %v674 = vld [vmem:[%s5 + $0x8] sm:$0xf]
        %v675 = vld [vmem:[%s5 + $0xc] sm:$0xf]
        %v676 = vld [vmem:[%s5 + $0x10] sm:$0xf]
        %v677 = vld [vmem:[%s5 + $0x14] sm:$0xf]
        %v678 = vld [vmem:[%s5 + $0x18] sm:$0xf]
        %v679 = vld [vmem:[%s5 + $0x1c] sm:$0xf]
        %v688 = vunpack.c.l.b16 %v672
        %v689 = vunpack.c.l.b16 %v673
        %v690 = vunpack.c.l.b16 %v674
        %v691 = vunpack.c.l.b16 %v675
        %v692 = vunpack.c.l.b16 %v676
        %v693 = vunpack.c.l.b16 %v677
        %v694 = vunpack.c.l.b16 %v678
        %v695 = vunpack.c.l.b16 %v679
        %v696 = vpack.c.b16 %v689, %v688
        %v697 = vpack.c.b16 %v691, %v690
        %v698 = vpack.c.b16 %v693, %v692
        %v699 = vpack.c.b16 %v695, %v694
        %v705 = vsel %vm602, %v671, 0
        %707 = vmatprep.subr.bf16.mxu0 0
        %708 = vmatpush1.bf16.msra.mxu0 %v696
        %709 = vmatprep.subr.bf16.mxu0 0
        %710 = vmatpush1.bf16.msra.mxu0 %v697
        %711 = vmatprep.subr.bf16.mxu0 0
        %712 = vmatpush1.bf16.msra.mxu0 %v698
        %713 = vmatprep.subr.bf16.mxu0 0
        %714 = vmatpush1.bf16.msra.mxu0 %v699
        %715 = vmatprep.subr.bf16.mxu0 0
        %716 = vmatpush1.bf16.msra.mxu0 0
        %717 = vmatprep.subr.bf16.mxu0 0
        %718 = vmatpush1.bf16.msra.mxu0 0
        %719 = vmatprep.subr.bf16.mxu0 0
        %720 = vmatpush1.bf16.msra.mxu0 0
        %721 = vmatprep.subr.bf16.mxu0 0
        %722 = vmatpush1.bf16.msra.mxu0 0
        %723 = vmatprep.subr.bf16.mxu0 0
        %724 = vmatpush1.bf16.msra.mxu0 0
        %725 = vmatprep.subr.bf16.mxu0 0
        %726 = vmatpush1.bf16.msra.mxu0 0
        %727 = vmatprep.subr.bf16.mxu0 0
        %728 = vmatpush1.bf16.msra.mxu0 0
        %729 = vmatprep.subr.bf16.mxu0 0
        %730 = vmatpush1.bf16.msra.mxu0 0
        %731 = vmatprep.subr.bf16.mxu0 0
        %732 = vmatpush1.bf16.msra.mxu0 0
        %733 = vmatprep.subr.bf16.mxu0 0
        %734 = vmatpush1.bf16.msra.mxu0 0
        %735 = vmatprep.subr.bf16.mxu0 0
        %736 = vmatpush1.bf16.msra.mxu0 0
        %737 = vmatprep.subr.bf16.mxu0 0
        %738 = vmatpush1.bf16.msra.mxu0 0
        %739 = vmatprep.mubr.bf16.mxu0 0
        %740 = vmatmul.mubr.bf16.gmra.mrb[0].mxu0 %v705
        %v741 = vpop.f32.mrb[0].mxu0
        %v742 = vadd.f32 0.0, %v741
        %v743 = vpop.f32.mrb[0].mxu0
        %v744 = vpop.f32.mrb[0].mxu0
        %v745 = vpop.f32.mrb[0].mxu0
        %746 = vdwg.mxu0
        %v747 = vld [vmem:[%s6] sm:$0xf]
        %v748 = vld [vmem:[%s6 + $0x4] sm:$0xf]
        %v749 = vld [vmem:[%s6 + $0x8] sm:$0xf]
        %v750 = vld [vmem:[%s6 + $0xc] sm:$0xf]
        %v751 = vld [vmem:[%s6 + $0x10] sm:$0xf]
        %v752 = vld [vmem:[%s6 + $0x14] sm:$0xf]
        %v753 = vld [vmem:[%s6 + $0x18] sm:$0xf]
        %v754 = vld [vmem:[%s6 + $0x1c] sm:$0xf]
        %v763 = vunpack.c.l.b16 %v747
        %v764 = vunpack.c.l.b16 %v748
        %v765 = vunpack.c.l.b16 %v749
        %v766 = vunpack.c.l.b16 %v750
        %v767 = vunpack.c.l.b16 %v751
        %v768 = vunpack.c.l.b16 %v752
        %v769 = vunpack.c.l.b16 %v753
        %v770 = vunpack.c.l.b16 %v754
        %v771 = vpack.c.b16 %v764, %v763
        %v772 = vpack.c.b16 %v766, %v765
        %v773 = vpack.c.b16 %v768, %v767
        %v774 = vpack.c.b16 %v770, %v769
        %779 = vmatprep.subr.bf16.mxu0 0
        %780 = vmatpush1.bf16.msra.mxu0 %v771
        %781 = vmatprep.subr.bf16.mxu0 0
        %782 = vmatpush1.bf16.msra.mxu0 %v772
        %783 = vmatprep.subr.bf16.mxu0 0
        %784 = vmatpush1.bf16.msra.mxu0 %v773
        %785 = vmatprep.subr.bf16.mxu0 0
        %786 = vmatpush1.bf16.msra.mxu0 %v774
        %787 = vmatprep.subr.bf16.mxu0 0
        %788 = vmatpush1.bf16.msra.mxu0 0
        %789 = vmatprep.subr.bf16.mxu0 0
        %790 = vmatpush1.bf16.msra.mxu0 0
        %791 = vmatprep.subr.bf16.mxu0 0
        %792 = vmatpush1.bf16.msra.mxu0 0
        %793 = vmatprep.subr.bf16.mxu0 0
        %794 = vmatpush1.bf16.msra.mxu0 0
        %795 = vmatprep.subr.bf16.mxu0 0
        %796 = vmatpush1.bf16.msra.mxu0 0
        %797 = vmatprep.subr.bf16.mxu0 0
        %798 = vmatpush1.bf16.msra.mxu0 0
        %799 = vmatprep.subr.bf16.mxu0 0
        %800 = vmatpush1.bf16.msra.mxu0 0
        %801 = vmatprep.subr.bf16.mxu0 0
        %802 = vmatpush1.bf16.msra.mxu0 0
        %803 = vmatprep.subr.bf16.mxu0 0
        %804 = vmatpush1.bf16.msra.mxu0 0
        %805 = vmatprep.subr.bf16.mxu0 0
        %806 = vmatpush1.bf16.msra.mxu0 0
        %807 = vmatprep.subr.bf16.mxu0 0
        %808 = vmatpush1.bf16.msra.mxu0 0
        %809 = vmatprep.subr.bf16.mxu0 0
        %810 = vmatpush1.bf16.msra.mxu0 0
        %811 = vmatprep.mubr.bf16.mxu0 0
        %812 = vmatmul.mubr.bf16.gmra.mrb[0].mxu0 %v705
        %v813 = vpop.f32.mrb[0].mxu0
        %v814 = vadd.f32 0.0, %v813
        %v815 = vpop.f32.mrb[0].mxu0
        %v816 = vpop.f32.mrb[0].mxu0
        %v817 = vpop.f32.mrb[0].mxu0
        %818 = vdwg.mxu0
        %vm819 = vcmask 64512
        %820 = vst.msk [vmem:[#allocation8] sm:$0xff] %vm819, %v814
        %v821 = vld [vmem:[%s7] sm:$0xf]
        %v822 = vld [vmem:[%s7 + $0x4] sm:$0xf]
        %v823 = vld [vmem:[%s7 + $0x8] sm:$0xf]
        %v824 = vld [vmem:[%s7 + $0xc] sm:$0xf]
        %v825 = vld [vmem:[%s7 + $0x10] sm:$0xf]
        %v826 = vld [vmem:[%s7 + $0x14] sm:$0xf]
        %v827 = vld [vmem:[%s7 + $0x18] sm:$0xf]
        %v828 = vld [vmem:[%s7 + $0x1c] sm:$0xf]
        %v837 = vunpack.c.l.b16 %v821
        %v838 = vunpack.c.l.b16 %v822
        %v839 = vunpack.c.l.b16 %v823
        %v840 = vunpack.c.l.b16 %v824
        %v841 = vunpack.c.l.b16 %v825
        %v842 = vunpack.c.l.b16 %v826
        %v843 = vunpack.c.l.b16 %v827
        %v844 = vunpack.c.l.b16 %v828
        %v845 = vpack.c.b16 %v838, %v837
        %v846 = vpack.c.b16 %v840, %v839
        %v847 = vpack.c.b16 %v842, %v841
        %v848 = vpack.c.b16 %v844, %v843
        %853 = vmatprep.subr.bf16.mxu0 0
        %854 = vmatpush1.bf16.msra.mxu0 %v845
        %855 = vmatprep.subr.bf16.mxu0 0
        %856 = vmatpush1.bf16.msra.mxu0 %v846
        %857 = vmatprep.subr.bf16.mxu0 0
        %858 = vmatpush1.bf16.msra.mxu0 %v847
        %859 = vmatprep.subr.bf16.mxu0 0
        %860 = vmatpush1.bf16.msra.mxu0 %v848
        %861 = vmatprep.subr.bf16.mxu0 0
        %862 = vmatpush1.bf16.msra.mxu0 0
        %863 = vmatprep.subr.bf16.mxu0 0
        %864 = vmatpush1.bf16.msra.mxu0 0
        %865 = vmatprep.subr.bf16.mxu0 0
        %866 = vmatpush1.bf16.msra.mxu0 0
        %867 = vmatprep.subr.bf16.mxu0 0
        %868 = vmatpush1.bf16.msra.mxu0 0
        %869 = vmatprep.subr.bf16.mxu0 0
        %870 = vmatpush1.bf16.msra.mxu0 0
        %871 = vmatprep.subr.bf16.mxu0 0
        %872 = vmatpush1.bf16.msra.mxu0 0
        %873 = vmatprep.subr.bf16.mxu0 0
        %874 = vmatpush1.bf16.msra.mxu0 0
        %875 = vmatprep.subr.bf16.mxu0 0
        %876 = vmatpush1.bf16.msra.mxu0 0
        %877 = vmatprep.subr.bf16.mxu0 0
        %878 = vmatpush1.bf16.msra.mxu0 0
        %879 = vmatprep.subr.bf16.mxu0 0
        %880 = vmatpush1.bf16.msra.mxu0 0
        %881 = vmatprep.subr.bf16.mxu0 0
        %882 = vmatpush1.bf16.msra.mxu0 0
        %883 = vmatprep.subr.bf16.mxu0 0
        %884 = vmatpush1.bf16.msra.mxu0 0
        %885 = vmatprep.mubr.bf16.mxu0 0
        %886 = vmatmul.mubr.bf16.gmra.mrb[0].mxu0 %v705
        %v887 = vpop.f32.mrb[0].mxu0
        %v888 = vadd.f32 0.0, %v887
        %v889 = vpop.f32.mrb[0].mxu0
        %v890 = vpop.f32.mrb[0].mxu0
        %v891 = vpop.f32.mrb[0].mxu0
        %892 = vdwg.mxu0
        %893 = vst.msk [vmem:[#allocation9] sm:$0xff] %vm819, %v888
        %v894 = vld [vmem:[%s8] sm:$0x3]
        %v895 = vld [vmem:[%s9] sm:$0x1]
        %v897 = vlaneseq
        %v898 = vshrl.u32 %v897, 7
        %v899 = vsub.s32 0, %v898
        %v900 = vrot.slane %v895, %v899
        %vm902 = vcmask 15360
        %v904 = vsel %vm902, %v742, 0
        %v907 = vsel %vm643, %v894, 0
        %909 = vmatprep.subr.mxu0 0.0
        %910 = vmatpush1.msra.mxu0 %v907
        %911 = vmatprep.subr.mxu0 0.0
        %912 = vmatpush1.msra.mxu0 0.0
        %913 = vmatprep.subr.mxu0 0.0
        %914 = vmatpush1.msra.mxu0 0.0
        %915 = vmatprep.subr.mxu0 0.0
        %916 = vmatpush1.msra.mxu0 0.0
        %917 = vmatprep.subr.mxu0 0.0
        %918 = vmatpush1.msra.mxu0 0.0
        %919 = vmatprep.subr.mxu0 0.0
        %920 = vmatpush1.msra.mxu0 0.0
        %921 = vmatprep.subr.mxu0 0.0
        %922 = vmatpush1.msra.mxu0 0.0
        %923 = vmatprep.subr.mxu0 0.0
        %924 = vmatpush1.msra.mxu0 0.0
        %925 = vmatprep.subr.mxu0 0.0
        %926 = vmatpush1.msra.mxu0 0.0
        %927 = vmatprep.subr.mxu0 0.0
        %928 = vmatpush1.msra.mxu0 0.0
        %929 = vmatprep.subr.mxu0 0.0
        %930 = vmatpush1.msra.mxu0 0.0
        %931 = vmatprep.subr.mxu0 0.0
        %932 = vmatpush1.msra.mxu0 0.0
        %933 = vmatprep.subr.mxu0 0.0
        %934 = vmatpush1.msra.mxu0 0.0
        %935 = vmatprep.subr.mxu0 0.0
        %936 = vmatpush1.msra.mxu0 0.0
        %937 = vmatprep.subr.mxu0 0.0
        %938 = vmatpush1.msra.mxu0 0.0
        %939 = vmatprep.subr.mxu0 0.0
        %940 = vmatpush1.msra.mxu0 0.0
        %941 = vmatprep.subr.mxu0 0.0
        %942 = vmatpush1.msra.mxu0 0.0
        %943 = vmatprep.subr.mxu0 0.0
        %944 = vmatpush1.msra.mxu0 0.0
        %945 = vmatprep.subr.mxu0 0.0
        %946 = vmatpush1.msra.mxu0 0.0
        %947 = vmatprep.subr.mxu0 0.0
        %948 = vmatpush1.msra.mxu0 0.0
        %949 = vmatprep.subr.mxu0 0.0
        %950 = vmatpush1.msra.mxu0 0.0
        %951 = vmatprep.subr.mxu0 0.0
        %952 = vmatpush1.msra.mxu0 0.0
        %953 = vmatprep.subr.mxu0 0.0
        %954 = vmatpush1.msra.mxu0 0.0
        %955 = vmatprep.subr.mxu0 0.0
        %956 = vmatpush1.msra.mxu0 0.0
        %957 = vmatprep.subr.mxu0 0.0
        %958 = vmatpush1.msra.mxu0 0.0
        %959 = vmatprep.subr.mxu0 0.0
        %960 = vmatpush1.msra.mxu0 0.0
        %961 = vmatprep.subr.mxu0 0.0
        %962 = vmatpush1.msra.mxu0 0.0
        %963 = vmatprep.subr.mxu0 0.0
        %964 = vmatpush1.msra.mxu0 0.0
        %965 = vmatprep.subr.mxu0 0.0
        %966 = vmatpush1.msra.mxu0 0.0
        %967 = vmatprep.subr.mxu0 0.0
        %968 = vmatpush1.msra.mxu0 0.0
        %969 = vmatprep.subr.mxu0 0.0
        %970 = vmatpush1.msra.mxu0 0.0
        %971 = vmatprep.subr.mxu0 0.0
        %972 = vmatpush1.msra.mxu0 0.0
        %973 = vmatprep.mubr.f32.mxu0 0.0
        %974 = vmatmul.mubr.f32.gmra.mrb[0].mxu0 %v904
        %v975 = vpop.f32.mrb[0].mxu0
        %v976 = vadd.f32 %v900, %v975
        %v977 = vpop.f32.mrb[0].mxu0
        %978 = vdwg.mxu0
        %v979 = vmax.f32 %v976, 0.0
        %vm980 = vcmp.ne.f32.partialorder %v976, %v976
        %v981 = vadd.f32 %v976, 0.0
        %v982 = vand.u32 2147483647, %v976
        %v983 = vsub.f32 0.0, %v982
        %v984 = vmul.f32 %v983, 1.442695
        %v985 = vpow.pop %v984
        %v986 = vadd.f32 %v985, 1.0
        %v987 = vlog2.pop %v986
        %v988 = vmul.f32 %v987, 0.6931472
        %v989 = vmul.f32 -0.5, %v985
        %v990 = vadd.f32 %v989, 1.0
        %v991 = vmul.f32 %v990, %v985
        %v992 = vand.u32 2147483647, %v985
        %vm993 = vcmp.lt.f32.partialorder %v992, 0.0004427343
        %v994 = vsel %vm993, %v991, %v988
        %v995 = vadd.f32 %v979, %v994
        %v996 = vsel %vm980, %v981, %v995
        %997 = vst.msk [vmem:[#allocation4] sm:$0xff] %vm602, %v996
        %v998 = vlaneseq
        %v999 = vshrl.u32 %v998, 7
        %v1000 = vlaneseq
        %v1001 = vand.u32 %v1000, 127
        %vm1002 = vcmp.eq.s32.totalorder %v999, %v1001
        %v1003 = vsel %vm1002, 1, 0
        %v1004 = vcvt.s32.f32 %v1003
        %v1005 = vld [vmem:[%s10] sm:$0xff]
        %v1006 = vmul.f32 %v1005, 1.442695
        %v1007 = vpow.pop %v1006
        %v1008 = vsub.f32 0.0, %v1007
        %v1009 = vld [vmem:[#allocation3] sm:$0xff]
        %v1010 = vld [vmem:[#allocation8] sm:$0xff]
        %v1011 = vld [vmem:[#allocation9] sm:$0xff]
        %v1013 = vsel %vm819, %v1004, 0
        %v1016 = vsel %vm819, %v1010, 0
        %1018 = vmatprep.subr.mxu0 0.0
        %1019 = vmatpush1.xpose.msra.mxu0 %v1016
        %1020 = vmatprep.subr.mxu0 0.0
        %1021 = vmatpush1.xpose.msra.mxu0 0.0
        %1022 = vmatprep.subr.mxu0 0.0
        %1023 = vmatpush1.xpose.msra.mxu0 0.0
        %1024 = vmatprep.subr.mxu0 0.0
        %1025 = vmatpush1.xpose.msra.mxu0 0.0
        %1026 = vmatprep.subr.mxu0 0.0
        %1027 = vmatpush1.xpose.msra.mxu0 0.0
        %1028 = vmatprep.subr.mxu0 0.0
        %1029 = vmatpush1.xpose.msra.mxu0 0.0
        %1030 = vmatprep.subr.mxu0 0.0
        %1031 = vmatpush1.xpose.msra.mxu0 0.0
        %1032 = vmatprep.subr.mxu0 0.0
        %1033 = vmatpush1.xpose.msra.mxu0 0.0
        %1034 = vmatprep.subr.mxu0 0.0
        %1035 = vmatpush1.xpose.msra.mxu0 0.0
        %1036 = vmatprep.subr.mxu0 0.0
        %1037 = vmatpush1.xpose.msra.mxu0 0.0
        %1038 = vmatprep.subr.mxu0 0.0
        %1039 = vmatpush1.xpose.msra.mxu0 0.0
        %1040 = vmatprep.subr.mxu0 0.0
        %1041 = vmatpush1.xpose.msra.mxu0 0.0
        %1042 = vmatprep.subr.mxu0 0.0
        %1043 = vmatpush1.xpose.msra.mxu0 0.0
        %1044 = vmatprep.subr.mxu0 0.0
        %1045 = vmatpush1.xpose.msra.mxu0 0.0
        %1046 = vmatprep.subr.mxu0 0.0
        %1047 = vmatpush1.xpose.msra.mxu0 0.0
        %1048 = vmatprep.subr.mxu0 0.0
        %1049 = vmatpush1.xpose.msra.mxu0 0.0
        %1050 = vmatprep.subr.mxu0 0.0
        %1051 = vmatpush1.xpose.msra.mxu0 0.0
        %1052 = vmatprep.subr.mxu0 0.0
        %1053 = vmatpush1.xpose.msra.mxu0 0.0
        %1054 = vmatprep.subr.mxu0 0.0
        %1055 = vmatpush1.xpose.msra.mxu0 0.0
        %1056 = vmatprep.subr.mxu0 0.0
        %1057 = vmatpush1.xpose.msra.mxu0 0.0
        %1058 = vmatprep.subr.mxu0 0.0
        %1059 = vmatpush1.xpose.msra.mxu0 0.0
        %1060 = vmatprep.subr.mxu0 0.0
        %1061 = vmatpush1.xpose.msra.mxu0 0.0
        %1062 = vmatprep.subr.mxu0 0.0
        %1063 = vmatpush1.xpose.msra.mxu0 0.0
        %1064 = vmatprep.subr.mxu0 0.0
        %1065 = vmatpush1.xpose.msra.mxu0 0.0
        %1066 = vmatprep.subr.mxu0 0.0
        %1067 = vmatpush1.xpose.msra.mxu0 0.0
        %1068 = vmatprep.subr.mxu0 0.0
        %1069 = vmatpush1.xpose.msra.mxu0 0.0
        %1070 = vmatprep.subr.mxu0 0.0
        %1071 = vmatpush1.xpose.msra.mxu0 0.0
        %1072 = vmatprep.subr.mxu0 0.0
        %1073 = vmatpush1.xpose.msra.mxu0 0.0
        %1074 = vmatprep.subr.mxu0 0.0
        %1075 = vmatpush1.xpose.msra.mxu0 0.0
        %1076 = vmatprep.subr.mxu0 0.0
        %1077 = vmatpush1.xpose.msra.mxu0 0.0
        %1078 = vmatprep.subr.mxu0 0.0
        %1079 = vmatpush1.xpose.msra.mxu0 0.0
        %1080 = vmatprep.subr.mxu0 0.0
        %1081 = vmatpush1.xpose.msra.mxu0 0.0
        %1082 = vmatprep.mubr.f32.mxu0 0.0
        %1083 = vmatmul.mubr.f32.gmra.mrb[0].mxu0 %v1013
        %v1084 = vpop.f32.mrb[0].mxu0
        %v1085 = vadd.f32 0.0, %v1084
        %v1086 = vpop.f32.mrb[0].mxu0
        %1087 = vdwg.mxu0
        %v1089 = vsel %vm819, %v1011, 0
        %1091 = vmatprep.subr.mxu0 0.0
        %1092 = vmatpush1.xpose.msra.mxu0 %v1089
        %1093 = vmatprep.subr.mxu0 0.0
        %1094 = vmatpush1.xpose.msra.mxu0 0.0
        %1095 = vmatprep.subr.mxu0 0.0
        %1096 = vmatpush1.xpose.msra.mxu0 0.0
        %1097 = vmatprep.subr.mxu0 0.0
        %1098 = vmatpush1.xpose.msra.mxu0 0.0
        %1099 = vmatprep.subr.mxu0 0.0
        %1100 = vmatpush1.xpose.msra.mxu0 0.0
        %1101 = vmatprep.subr.mxu0 0.0
        %1102 = vmatpush1.xpose.msra.mxu0 0.0
        %1103 = vmatprep.subr.mxu0 0.0
        %1104 = vmatpush1.xpose.msra.mxu0 0.0
        %1105 = vmatprep.subr.mxu0 0.0
        %1106 = vmatpush1.xpose.msra.mxu0 0.0
        %1107 = vmatprep.subr.mxu0 0.0
        %1108 = vmatpush1.xpose.msra.mxu0 0.0
        %1109 = vmatprep.subr.mxu0 0.0
        %1110 = vmatpush1.xpose.msra.mxu0 0.0
        %1111 = vmatprep.subr.mxu0 0.0
        %1112 = vmatpush1.xpose.msra.mxu0 0.0
        %1113 = vmatprep.subr.mxu0 0.0
        %1114 = vmatpush1.xpose.msra.mxu0 0.0
        %1115 = vmatprep.subr.mxu0 0.0
        %1116 = vmatpush1.xpose.msra.mxu0 0.0
        %1117 = vmatprep.subr.mxu0 0.0
        %1118 = vmatpush1.xpose.msra.mxu0 0.0
        %1119 = vmatprep.subr.mxu0 0.0
        %1120 = vmatpush1.xpose.msra.mxu0 0.0
        %1121 = vmatprep.subr.mxu0 0.0
        %1122 = vmatpush1.xpose.msra.mxu0 0.0
        %1123 = vmatprep.subr.mxu0 0.0
        %1124 = vmatpush1.xpose.msra.mxu0 0.0
        %1125 = vmatprep.subr.mxu0 0.0
        %1126 = vmatpush1.xpose.msra.mxu0 0.0
        %1127 = vmatprep.subr.mxu0 0.0
        %1128 = vmatpush1.xpose.msra.mxu0 0.0
        %1129 = vmatprep.subr.mxu0 0.0
        %1130 = vmatpush1.xpose.msra.mxu0 0.0
        %1131 = vmatprep.subr.mxu0 0.0
        %1132 = vmatpush1.xpose.msra.mxu0 0.0
        %1133 = vmatprep.subr.mxu0 0.0
        %1134 = vmatpush1.xpose.msra.mxu0 0.0
        %1135 = vmatprep.subr.mxu0 0.0
        %1136 = vmatpush1.xpose.msra.mxu0 0.0
        %1137 = vmatprep.subr.mxu0 0.0
        %1138 = vmatpush1.xpose.msra.mxu0 0.0
        %1139 = vmatprep.subr.mxu0 0.0
        %1140 = vmatpush1.xpose.msra.mxu0 0.0
        %1141 = vmatprep.subr.mxu0 0.0
        %1142 = vmatpush1.xpose.msra.mxu0 0.0
        %1143 = vmatprep.subr.mxu0 0.0
        %1144 = vmatpush1.xpose.msra.mxu0 0.0
        %1145 = vmatprep.subr.mxu0 0.0
        %1146 = vmatpush1.xpose.msra.mxu0 0.0
        %1147 = vmatprep.subr.mxu0 0.0
        %1148 = vmatpush1.xpose.msra.mxu0 0.0
        %1149 = vmatprep.subr.mxu0 0.0
        %1150 = vmatpush1.xpose.msra.mxu0 0.0
        %1151 = vmatprep.subr.mxu0 0.0
        %1152 = vmatpush1.xpose.msra.mxu0 0.0
        %1153 = vmatprep.subr.mxu0 0.0
        %1154 = vmatpush1.xpose.msra.mxu0 0.0
        %1155 = vmatprep.mubr.f32.mxu0 0.0
        %1156 = vmatmul.mubr.f32.gmra.mrb[0].mxu0 %v1013
        %v1157 = vpop.f32.mrb[0].mxu0
        %v1158 = vadd.f32 0.0, %v1157
        %v1159 = vpop.f32.mrb[0].mxu0
        %1160 = vdwg.mxu0
        %v1161 = vld [vmem:[#allocation4] sm:$0xff]
        %v1162 = vld [vmem:[#allocation5] sm:$0xff]
        %v1163 = vmul.f32 %v1161, %v1162
        %v1164 = vlaneseq
        %v1165 = vshrl.u32 %v1164, 7
        %v1166 = vsub.s32 0, %v1165
        %v1167 = vrot.slane %v1161, %v1166
        %v1168 = vmul.f32 %v1008, %v1167
        %v1169 = vmul.f32 %v1168, 1.442695
        %v1170 = vpow.pop %v1169
        %v1171 = vlaneseq
        %v1172 = vshrl.u32 %v1171, 7
        %v1173 = vsub.s32 1, %v1172
        %v1174 = vrot.slane %v1161, %v1173
        %v1175 = vmul.f32 %v1008, %v1174
        %v1176 = vmul.f32 %v1175, 1.442695
        %v1177 = vpow.pop %v1176
        %v1178 = vlaneseq
        %v1179 = vshrl.u32 %v1178, 7
        %v1180 = vsub.s32 2, %v1179
        %v1181 = vrot.slane %v1161, %v1180
        %v1182 = vmul.f32 %v1008, %v1181
        %v1183 = vmul.f32 %v1182, 1.442695
        %v1184 = vpow.pop %v1183
        %v1185 = vlaneseq
        %v1186 = vshrl.u32 %v1185, 7
        %v1187 = vsub.s32 3, %v1186
        %v1188 = vrot.slane %v1161, %v1187
        %v1189 = vmul.f32 %v1008, %v1188
        %v1190 = vmul.f32 %v1189, 1.442695
        %v1191 = vpow.pop %v1190
        %v1192 = vlaneseq
        %v1193 = vshrl.u32 %v1192, 7
        %v1194 = vsub.s32 4, %v1193
        %v1195 = vrot.slane %v1161, %v1194
        %v1196 = vmul.f32 %v1008, %v1195
        %v1197 = vmul.f32 %v1196, 1.442695
        %v1198 = vpow.pop %v1197
        %v1199 = vlaneseq
        %v1200 = vshrl.u32 %v1199, 7
        %v1201 = vsub.s32 5, %v1200
        %v1202 = vrot.slane %v1161, %v1201
        %v1203 = vmul.f32 %v1008, %v1202
        %v1204 = vmul.f32 %v1203, 1.442695
        %v1205 = vpow.pop %v1204
        %v1206 = vlaneseq
        %v1207 = vshrl.u32 %v1206, 7
        %v1208 = vsub.s32 6, %v1207
        %v1209 = vrot.slane %v1161, %v1208
        %v1210 = vmul.f32 %v1008, %v1209
        %v1211 = vmul.f32 %v1210, 1.442695
        %v1212 = vpow.pop %v1211
        %v1213 = vlaneseq
        %v1214 = vshrl.u32 %v1213, 7
        %v1215 = vsub.s32 7, %v1214
        %v1216 = vrot.slane %v1161, %v1215
        %v1217 = vmul.f32 %v1008, %v1216
        %v1218 = vmul.f32 %v1217, 1.442695
        %v1219 = vpow.pop %v1218
        %1221 = vset.pattern.permute.xlu0 0
        %1222 = vperm.xlu0 %1221, %v1085
        %v1223 = vpop.permute.xlu0 %1222
        %v1225 = vlaneseq
        %v1226 = vshrl.u32 %v1225, 7
        %v1227 = vsub.s32 0, %v1226
        %v1228 = vrot.slane %v1163, %v1227
        %v1229 = vmul.f32 %v1223, %v1228
        %1230 = vset.pattern.permute.xlu0 1
        %1231 = vperm.xlu0 %1230, %v1085
        %v1232 = vpop.permute.xlu0 %1231
        %v1234 = vlaneseq
        %v1235 = vshrl.u32 %v1234, 7
        %v1236 = vsub.s32 1, %v1235
        %v1237 = vrot.slane %v1163, %v1236
        %v1238 = vmul.f32 %v1232, %v1237
        %1239 = vset.pattern.permute.xlu0 2
        %1240 = vperm.xlu0 %1239, %v1085
        %v1241 = vpop.permute.xlu0 %1240
        %v1243 = vlaneseq
        %v1244 = vshrl.u32 %v1243, 7
        %v1245 = vsub.s32 2, %v1244
        %v1246 = vrot.slane %v1163, %v1245
        %v1247 = vmul.f32 %v1241, %v1246
        %1248 = vset.pattern.permute.xlu0 3
        %1249 = vperm.xlu0 %1248, %v1085
        %v1250 = vpop.permute.xlu0 %1249
        %v1252 = vlaneseq
        %v1253 = vshrl.u32 %v1252, 7
        %v1254 = vsub.s32 3, %v1253
        %v1255 = vrot.slane %v1163, %v1254
        %v1256 = vmul.f32 %v1250, %v1255
        %1257 = vset.pattern.permute.xlu0 4
        %1258 = vperm.xlu0 %1257, %v1085
        %v1259 = vpop.permute.xlu0 %1258
        %v1261 = vlaneseq
        %v1262 = vshrl.u32 %v1261, 7
        %v1263 = vsub.s32 4, %v1262
        %v1264 = vrot.slane %v1163, %v1263
        %v1265 = vmul.f32 %v1259, %v1264
        %1266 = vset.pattern.permute.xlu0 5
        %1267 = vperm.xlu0 %1266, %v1085
        %v1268 = vpop.permute.xlu0 %1267
        %v1270 = vlaneseq
        %v1271 = vshrl.u32 %v1270, 7
        %v1272 = vsub.s32 5, %v1271
        %v1273 = vrot.slane %v1163, %v1272
        %v1274 = vmul.f32 %v1268, %v1273
        %1275 = vset.pattern.permute.xlu0 6
        %1276 = vperm.xlu0 %1275, %v1085
        %v1277 = vpop.permute.xlu0 %1276
        %v1279 = vlaneseq
        %v1280 = vshrl.u32 %v1279, 7
        %v1281 = vsub.s32 6, %v1280
        %v1282 = vrot.slane %v1163, %v1281
        %v1283 = vmul.f32 %v1277, %v1282
        %1284 = vset.pattern.permute.xlu0 7
        %1285 = vperm.xlu0 %1284, %v1085
        %v1286 = vpop.permute.xlu0 %1285
        %v1288 = vlaneseq
        %v1289 = vshrl.u32 %v1288, 7
        %v1290 = vsub.s32 7, %v1289
        %v1291 = vrot.slane %v1163, %v1290
        %v1292 = vmul.f32 %v1286, %v1291
        %v1293 = vmul.f32 %v1170, %v1009
        %v1294 = vadd.f32 %v1293, %v1229
        %1296 = vset.pattern.permute.xlu0 0
        %1297 = vperm.xlu0 %1296, %v1158
        %v1298 = vpop.permute.xlu0 %1297
        %v1300 = vmul.f32 %v1298, %v1294
        %v1301 = vsel %vm602, %v1300, 0.0
        %v1302 = vrot.slane %v1301, 4
        %v1303 = vadd.f32 %v1301, %v1302
        %v1304 = vrot.slane %v1303, 2
        %v1305 = vadd.f32 %v1303, %v1304
        %v1306 = vrot.slane %v1305, 1
        %v1307 = vadd.f32 %v1305, %v1306
        %v1308 = vmul.f32 %v1177, %v1294
        %v1309 = vadd.f32 %v1308, %v1238
        %1310 = vset.pattern.permute.xlu0 1
        %1311 = vperm.xlu0 %1310, %v1158
        %v1312 = vpop.permute.xlu0 %1311
        %v1314 = vmul.f32 %v1312, %v1309
        %v1315 = vsel %vm602, %v1314, 0.0
        %v1316 = vrot.slane %v1315, 4
        %v1317 = vadd.f32 %v1315, %v1316
        %v1318 = vrot.slane %v1317, 2
        %v1319 = vadd.f32 %v1317, %v1318
        %v1320 = vrot.slane %v1319, 1
        %v1321 = vadd.f32 %v1319, %v1320
        %v1322 = vmul.f32 %v1184, %v1309
        %v1323 = vadd.f32 %v1322, %v1247
        %1324 = vset.pattern.permute.xlu0 2
        %1325 = vperm.xlu0 %1324, %v1158
        %v1326 = vpop.permute.xlu0 %1325
        %v1328 = vmul.f32 %v1326, %v1323
        %v1329 = vsel %vm602, %v1328, 0.0
        %v1330 = vrot.slane %v1329, 4
        %v1331 = vadd.f32 %v1329, %v1330
        %v1332 = vrot.slane %v1331, 2
        %v1333 = vadd.f32 %v1331, %v1332
        %v1334 = vrot.slane %v1333, 1
        %v1335 = vadd.f32 %v1333, %v1334
        %v1336 = vmul.f32 %v1191, %v1323
        %v1337 = vadd.f32 %v1336, %v1256
        %1338 = vset.pattern.permute.xlu0 3
        %1339 = vperm.xlu0 %1338, %v1158
        %v1340 = vpop.permute.xlu0 %1339
        %v1342 = vmul.f32 %v1340, %v1337
        %v1343 = vsel %vm602, %v1342, 0.0
        %v1344 = vrot.slane %v1343, 4
        %v1345 = vadd.f32 %v1343, %v1344
        %v1346 = vrot.slane %v1345, 2
        %v1347 = vadd.f32 %v1345, %v1346
        %v1348 = vrot.slane %v1347, 1
        %v1349 = vadd.f32 %v1347, %v1348
        %v1350 = vmul.f32 %v1198, %v1337
        %v1351 = vadd.f32 %v1350, %v1265
        %1352 = vset.pattern.permute.xlu0 4
        %1353 = vperm.xlu0 %1352, %v1158
        %v1354 = vpop.permute.xlu0 %1353
        %v1356 = vmul.f32 %v1354, %v1351
        %v1357 = vsel %vm602, %v1356, 0.0
        %v1358 = vrot.slane %v1357, 4
        %v1359 = vadd.f32 %v1357, %v1358
        %v1360 = vrot.slane %v1359, 2
        %v1361 = vadd.f32 %v1359, %v1360
        %v1362 = vrot.slane %v1361, 1
        %v1363 = vadd.f32 %v1361, %v1362
        %v1364 = vmul.f32 %v1205, %v1351
        %v1365 = vadd.f32 %v1364, %v1274
        %1366 = vset.pattern.permute.xlu0 5
        %1367 = vperm.xlu0 %1366, %v1158
        %v1368 = vpop.permute.xlu0 %1367
        %v1370 = vmul.f32 %v1368, %v1365
        %v1371 = vsel %vm602, %v1370, 0.0
        %v1372 = vrot.slane %v1371, 4
        %v1373 = vadd.f32 %v1371, %v1372
        %v1374 = vrot.slane %v1373, 2
        %v1375 = vadd.f32 %v1373, %v1374
        %v1376 = vrot.slane %v1375, 1
        %v1377 = vadd.f32 %v1375, %v1376
        %v1378 = vmul.f32 %v1212, %v1365
        %v1379 = vadd.f32 %v1378, %v1283
        %1380 = vset.pattern.permute.xlu0 6
        %1381 = vperm.xlu0 %1380, %v1158
        %v1382 = vpop.permute.xlu0 %1381
        %v1384 = vmul.f32 %v1382, %v1379
        %v1385 = vsel %vm602, %v1384, 0.0
        %v1386 = vrot.slane %v1385, 4
        %v1387 = vadd.f32 %v1385, %v1386
        %v1388 = vrot.slane %v1387, 2
        %v1389 = vadd.f32 %v1387, %v1388
        %v1390 = vrot.slane %v1389, 1
        %v1391 = vadd.f32 %v1389, %v1390
        %v1392 = vmul.f32 %v1219, %v1379
        %v1393 = vadd.f32 %v1392, %v1292
        %1394 = vset.pattern.permute.xlu0 7
        %1395 = vperm.xlu0 %1394, %v1158
        %v1396 = vpop.permute.xlu0 %1395
        %v1398 = vmul.f32 %v1396, %v1393
        %v1399 = vsel %vm602, %v1398, 0.0
        %v1400 = vrot.slane %v1399, 4
        %v1401 = vadd.f32 %v1399, %v1400
        %v1402 = vrot.slane %v1401, 2
        %v1403 = vadd.f32 %v1401, %v1402
        %v1404 = vrot.slane %v1403, 1
        %v1405 = vadd.f32 %v1403, %v1404
        %v1406 = vsel %vm657, %v1307, %v1321
        %v1407 = vsel %vm643, %v1406, %v1335
        %v1408 = vsel %vm629, %v1407, %v1349
        %vm1409 = vcmask 1043456
        %v1410 = vsel %vm1409, %v1408, %v1363
        %vm1411 = vcmask 1044480
        %v1412 = vsel %vm1411, %v1410, %v1377
        %vm1413 = vcmask 1045504
        %v1414 = vsel %vm1413, %v1412, %v1391
        %vm1415 = vcmask 1046528
        %v1416 = vsel %vm1415, %v1414, %v1405
        %1417 = vst.msk [vmem:[#allocation7] sm:$0xff] %vm602, %v1416
        %1418 = vst.msk [vmem:[#allocation3] sm:$0xff] %vm602, %v1393
        %v1419 = vld [vmem:[#allocation7] sm:$0xff]
        %v1420 = vld [vmem:[#allocation5] sm:$0xff]
        %v1421 = vld [vmem:[%s11] sm:$0x1]
        %v1423 = vlaneseq
        %v1424 = vshrl.u32 %v1423, 7
        %v1425 = vsub.s32 0, %v1424
        %v1426 = vrot.slane %v1421, %v1425
        %v1428 = vmul.f32 %v1420, %v1426
        %v1429 = vadd.f32 %v1419, %v1428
        %v1430 = vld [vmem:[#allocation6] sm:$0xff]
        %v1431 = vmul.f32 %v1429, %v1430
        %v1432 = vpack.c.bf16 %v1431, %v1431
        %v1433 = vld [vmem:[%s12] sm:$0xf]
        %v1434 = vld [vmem:[%s12 + $0x4] sm:$0xf]
        %v1435 = vld [vmem:[%s12 + $0x8] sm:$0xf]
        %v1436 = vld [vmem:[%s12 + $0xc] sm:$0xf]
        %v1437 = vld [vmem:[%s12 + $0x10] sm:$0xf]
        %v1438 = vld [vmem:[%s12 + $0x14] sm:$0xf]
        %v1439 = vld [vmem:[%s12 + $0x18] sm:$0xf]
        %v1440 = vld [vmem:[%s12 + $0x1c] sm:$0xf]
        %v1449 = vunpack.c.l.b16 %v1433
        %v1450 = vunpack.c.l.b16 %v1434
        %v1451 = vunpack.c.l.b16 %v1435
        %v1452 = vunpack.c.l.b16 %v1436
        %v1453 = vunpack.c.l.b16 %v1437
        %v1454 = vunpack.c.l.b16 %v1438
        %v1455 = vunpack.c.l.b16 %v1439
        %v1456 = vunpack.c.l.b16 %v1440
        %v1457 = vpack.c.b16 %v1450, %v1449
        %v1458 = vpack.c.b16 %v1452, %v1451
        %v1459 = vpack.c.b16 %v1454, %v1453
        %v1460 = vpack.c.b16 %v1456, %v1455
        %v1466 = vsel %vm602, %v1432, 0
        %1468 = vmatprep.subr.bf16.mxu0 0
        %1469 = vmatpush1.bf16.msra.mxu0 %v1457
        %1470 = vmatprep.subr.bf16.mxu0 0
        %1471 = vmatpush1.bf16.msra.mxu0 %v1458
        %1472 = vmatprep.subr.bf16.mxu0 0
        %1473 = vmatpush1.bf16.msra.mxu0 %v1459
        %1474 = vmatprep.subr.bf16.mxu0 0
        %1475 = vmatpush1.bf16.msra.mxu0 %v1460
        %1476 = vmatprep.subr.bf16.mxu0 0
        %1477 = vmatpush1.bf16.msra.mxu0 0
        %1478 = vmatprep.subr.bf16.mxu0 0
        %1479 = vmatpush1.bf16.msra.mxu0 0
        %1480 = vmatprep.subr.bf16.mxu0 0
        %1481 = vmatpush1.bf16.msra.mxu0 0
        %1482 = vmatprep.subr.bf16.mxu0 0
        %1483 = vmatpush1.bf16.msra.mxu0 0
        %1484 = vmatprep.subr.bf16.mxu0 0
        %1485 = vmatpush1.bf16.msra.mxu0 0
        %1486 = vmatprep.subr.bf16.mxu0 0
        %1487 = vmatpush1.bf16.msra.mxu0 0
        %1488 = vmatprep.subr.bf16.mxu0 0
        %1489 = vmatpush1.bf16.msra.mxu0 0
        %1490 = vmatprep.subr.bf16.mxu0 0
        %1491 = vmatpush1.bf16.msra.mxu0 0
        %1492 = vmatprep.subr.bf16.mxu0 0
        %1493 = vmatpush1.bf16.msra.mxu0 0
        %1494 = vmatprep.subr.bf16.mxu0 0
        %1495 = vmatpush1.bf16.msra.mxu0 0
        %1496 = vmatprep.subr.bf16.mxu0 0
        %1497 = vmatpush1.bf16.msra.mxu0 0
        %1498 = vmatprep.subr.bf16.mxu0 0
        %1499 = vmatpush1.bf16.msra.mxu0 0
        %1500 = vmatprep.mubr.bf16.mxu0 0
        %1501 = vmatmul.mubr.bf16.gmra.mrb[0].mxu0 %v1466
        %v1502 = vpop.f32.mrb[0].mxu0
        %v1503 = vadd.f32 0.0, %v1502
        %v1504 = vpop.f32.mrb[0].mxu0
        %v1505 = vpop.f32.mrb[0].mxu0
        %v1506 = vpop.f32.mrb[0].mxu0
        %1507 = vdwg.mxu0
        %1508 = vst.msk [vmem:[%s453] sm:$0xff] %vm495, %v1503
        %s1509 = sand.u32 %s329, 1
        %s1510 = scalar_lea.sflag [#allocation11], %s1509
        %s1511 = sand.u32 %s329, 1
        %s1512 = smul.addr %s1511, 8
        %s1513 = scalar_lea.vmem [#allocation10], %s1512
        // Predicated region
        $region81: #{tpu_custom_call.1} parent=71 // pred_check
          %p1514 = pneg %p339
        $region82: #{tpu_custom_call.1} parent=71 // pred_check_branch
          %1516 = sbr.rel (%p1514) target = $region84
        $region83: #{tpu_custom_call.1} parent=71 // pred_region
          %s1518 = ssub.s32 128, 128
          %1519 = vsyncadd %s1510, %s1518
          %s1520 = sadd.s32 %s32, %s31
          %s1521 = smul.addr %s1520, 128
          %s1522 = scalar_lea.hbm %s13, %s1521
          %s1524 = sshll.u32 %s1513, 4
          %s1525 = int_to_ptr.vmem [resolvable:$true] %s1524
          %1527 = dma.vmem_to_hbm [thread:$0]  %s1525, 128, %s1522, %s1510
        $region84: #{tpu_custom_call.1} parent=71 // pred_fallthru
          _
      $region72: #{tpu_custom_call.1} parent=5 // pred_fallthru
        _
      %p1528 = scmp.le.s32.totalorder 2, %s22
      // Predicated region
      $region85: #{tpu_custom_call.1} parent=5 // pred_check
        %p1529 = pneg %p1528
      $region86: #{tpu_custom_call.1} parent=5 // pred_check_branch
        %1531 = sbr.rel (%p1529) target = $region88
      $region87: #{tpu_custom_call.1} parent=5 // pred_region
        %s1532 = ssub.s32 %s22, 2
        // Predicated region
        $region89: #{tpu_custom_call.1} parent=87 // pred_check
          %p1533 = pneg %p345
        $region90: #{tpu_custom_call.1} parent=87 // pred_check_branch
          %1535 = sbr.rel (%p1533) target = $region92
        $region91: #{tpu_custom_call.1} parent=87 // pred_region
          %s1536 = sand.u32 %s330, 1
          %s1537 = scalar_lea.sflag [#allocation11], %s1536
          %s1538 = sand.u32 %s330, 1
          %s1539 = smul.addr %s1538, 8
          %s1540 = scalar_lea.vmem [#allocation10], %s1539
          %1541 = dma.done %s1537, 128
        $region92: #{tpu_custom_call.1} parent=87 // pred_fallthru
          _
      $region88: #{tpu_custom_call.1} parent=5 // pred_fallthru
        _
    $region6: #{tpu_custom_call.1} parent=1 // loop_footer
      %s26 = sadd.s32 1, %s22
    $region7: #{tpu_custom_call.1} parent=1 // loop_footer_branch
      %21 = sbr.rel target = $region3
    $region8: #{tpu_custom_call.1} parent=1 // loop_exit
      _
    %1542 = vsyncpa [#allocation11], 1
    %s1543 = scalar_lea.sflag [#allocation11], 1
    %1544 = vsyncpa %s1543, 1

</llo_original>
